<compile_context>
chip_gen: v6e
topology: v6e:2x2x1
jax: 0.10.0
libtpu: 0.0.40
codegen_flags: <defaults>
</compile_context>

<pallas_src>
import jax
import jax.numpy as jnp
from jax.experimental import pallas as pl
from jax.experimental.pallas import tpu as pltpu

EPS = 1e-5  # nn.BatchNorm1d default eps


def basic_block_kernel(x_ref, adj_ref,
                       w1_ref, b1_ref, g1_ref, be1_ref,
                       w2_ref, b2_ref, g2_ref, be2_ref,
                       o_ref):
    B, J, C = x_ref.shape
    N = B * J

    x = x_ref[...]                                          # (B, J, C) float32
    # (J, J) bf16 adjacency, broadcast once for the batched aggregation matmul.
    adj_b = jnp.broadcast_to(adj_ref[...][None], (B, J, J))

    def gconv_bn_relu(h2d, w, b, g, be):
        # h2d: (N, Cin) f32;  w: (Cin, D) bf16;  b/g/be: (1, D) f32
        D = w.shape[1]
        # vanilla graph conv:  A @ (X W) + b
        #  (1) one big lane-dense MXU matmul for the dense transform
        s2d = jnp.dot(h2d.astype(jnp.bfloat16), w,
                      preferred_element_type=jnp.float32)    # (N, D)
        #  (2) per-batch aggregation over the (small) node dim
        s3 = s2d.reshape(B, J, D).astype(jnp.bfloat16)
        h3 = jnp.einsum('bjk,bkd->bjd', adj_b, s3,
                        preferred_element_type=jnp.float32)  # (B, J, D)
        h = h3.reshape(N, D) + b
        # BatchNorm1d (training-mode batch stats per channel, biased variance);
        # reuse (h - mu) for both variance and normalization.
        mu = jnp.mean(h, axis=0, keepdims=True)              # (1, D)
        d = h - mu
        var = jnp.mean(d * d, axis=0, keepdims=True)
        hn = d * jax.lax.rsqrt(var + EPS) * g + be
        # ReLU (dropout is None)
        return jnp.maximum(hn, 0.0)                          # (N, D) f32

    x2d = x.reshape(N, C)
    h1 = gconv_bn_relu(x2d, w1_ref[...], b1_ref[...], g1_ref[...], be1_ref[...])
    h2 = gconv_bn_relu(h1, w2_ref[...], b2_ref[...], g2_ref[...], be2_ref[...])
    # residual add + final ReLU (f32)
    o_ref[...] = jnp.maximum(h2 + x2d, 0.0).reshape(B, J, C)


def basic_block(x, adj, params):
    """x: (B, J, C) float32, adj: (J, J) normalized adjacency."""
    B, J, C = x.shape
    vmem = pl.BlockSpec(memory_space=pltpu.MemorySpace.VMEM)
    args = (x,
            adj.astype(jnp.bfloat16),
            params["w1"].astype(jnp.bfloat16), params["b1"],
            params["g1"], params["be1"],
            params["w2"].astype(jnp.bfloat16), params["b2"],
            params["g2"], params["be2"])
    return pl.pallas_call(
        basic_block_kernel,
        out_shape=jax.ShapeDtypeStruct((B, J, C), x.dtype),
        in_specs=[vmem] * len(args),
        out_specs=vmem,
        compiler_params=pltpu.CompilerParams(vmem_limit_bytes=16 << 20),
    )(*args)


def make_params(key, input_dim, output_dim):
    """Deterministic parameter init: Glorot/Xavier-uniform weights (common GCN
    init), zero graph-conv bias, ones/zeros BN affine (PyTorch BN defaults)."""
    k1, k2 = jax.random.split(key, 2)
    bound1 = (6.0 / (input_dim + output_dim)) ** 0.5
    bound2 = (6.0 / (output_dim + output_dim)) ** 0.5
    return {
        "w1": jax.random.uniform(k1, (input_dim, output_dim), jnp.float32,
                                 -bound1, bound1),
        "b1": jnp.zeros((1, output_dim), jnp.float32),
        "g1": jnp.ones((1, output_dim), jnp.float32),
        "be1": jnp.zeros((1, output_dim), jnp.float32),
        "w2": jax.random.uniform(k2, (output_dim, output_dim), jnp.float32,
                                 -bound2, bound2),
        "b2": jnp.zeros((1, output_dim), jnp.float32),
        "g2": jnp.ones((1, output_dim), jnp.float32),
        "be2": jnp.zeros((1, output_dim), jnp.float32),
    }


def make_chain_adjacency(num_nodes):
    """Symmetric-normalized adjacency D^-1/2 (A+I) D^-1/2 of a chain graph."""
    a = jnp.zeros((num_nodes, num_nodes), jnp.float32)
    idx = jnp.arange(num_nodes - 1)
    a = a.at[idx, idx + 1].set(1.0)
    a = a.at[idx + 1, idx].set(1.0)
    a_hat = a + jnp.eye(num_nodes, dtype=jnp.float32)
    deg = jnp.sum(a_hat, axis=1)
    d_inv_sqrt = 1.0 / jnp.sqrt(deg)
    return a_hat * d_inv_sqrt[:, None] * d_inv_sqrt[None, :]


if __name__ == "__main__":
    # batch, graph nodes (pose joints), channels (typical hid_dim=128; lane-dense,
    # and B*J = 128 so the flat dense matmul is a full MXU tile of rows)
    B, J, C = 8, 16, 128

    key = jax.random.PRNGKey(0)
    kx, kp = jax.random.split(key)
    x = jax.random.normal(kx, (B, J, C), jnp.float32)
    adj = make_chain_adjacency(J)
    params = make_params(kp, C, C)

    out = basic_block(x, adj, params)
    out = jax.block_until_ready(out)
    assert out.shape == (B, J, C)
    assert bool(jnp.all(jnp.isfinite(out)))
    print("KERNEL_OK")
</pallas_src>

<mosaic_0001>
module attributes {stable_mosaic.version = 11 : i64} {
  func.func @basic_block_kernel(%arg0: memref<8x16x128xf32, #tpu.memory_space<vmem>>, %arg1: memref<16x16xbf16, #tpu.memory_space<vmem>>, %arg2: memref<128x128xbf16, #tpu.memory_space<vmem>>, %arg3: memref<1x128xf32, #tpu.memory_space<vmem>>, %arg4: memref<1x128xf32, #tpu.memory_space<vmem>>, %arg5: memref<1x128xf32, #tpu.memory_space<vmem>>, %arg6: memref<128x128xbf16, #tpu.memory_space<vmem>>, %arg7: memref<1x128xf32, #tpu.memory_space<vmem>>, %arg8: memref<1x128xf32, #tpu.memory_space<vmem>>, %arg9: memref<1x128xf32, #tpu.memory_space<vmem>>, %arg10: memref<8x16x128xf32, #tpu.memory_space<vmem>>) attributes {dimension_semantics = [], scalar_prefetch = 0 : i64, scratch_operands = 0 : i64, tpu.core_type = #tpu.core_type<tc>} {
    %c0 = arith.constant 0 : index
    %c0_0 = arith.constant 0 : index
    %c0_1 = arith.constant 0 : index
    %0 = vector.load %arg0[%c0, %c0_0, %c0_1] : memref<8x16x128xf32, #tpu.memory_space<vmem>>, vector<8x16x128xf32>
    %c0_2 = arith.constant 0 : index
    %c0_3 = arith.constant 0 : index
    %1 = vector.load %arg1[%c0_2, %c0_3] : memref<16x16xbf16, #tpu.memory_space<vmem>>, vector<16x16xbf16>
    %2 = vector.shape_cast %1 : vector<16x16xbf16> to vector<1x16x16xbf16>
    %3 = vector.shape_cast %2 : vector<1x16x16xbf16> to vector<1x16x16xbf16>
    %4 = vector.broadcast %3 : vector<1x16x16xbf16> to vector<8x16x16xbf16>
    %5 = vector.shape_cast %0 : vector<8x16x128xf32> to vector<128x128xf32>
    %c0_4 = arith.constant 0 : index
    %c0_5 = arith.constant 0 : index
    %6 = vector.load %arg2[%c0_4, %c0_5] : memref<128x128xbf16, #tpu.memory_space<vmem>>, vector<128x128xbf16>
    %c0_6 = arith.constant 0 : index
    %c0_7 = arith.constant 0 : index
    %7 = vector.load %arg3[%c0_6, %c0_7] : memref<1x128xf32, #tpu.memory_space<vmem>>, vector<1x128xf32>
    %c0_8 = arith.constant 0 : index
    %c0_9 = arith.constant 0 : index
    %8 = vector.load %arg4[%c0_8, %c0_9] : memref<1x128xf32, #tpu.memory_space<vmem>>, vector<1x128xf32>
    %c0_10 = arith.constant 0 : index
    %c0_11 = arith.constant 0 : index
    %9 = vector.load %arg5[%c0_10, %c0_11] : memref<1x128xf32, #tpu.memory_space<vmem>>, vector<1x128xf32>
    %10 = arith.truncf %5 : vector<128x128xf32> to vector<128x128xbf16>
    %cst = arith.constant dense<0.000000e+00> : vector<128x128xf32>
    %11 = tpu.matmul %10, %6, %cst {dimension_numbers = #tpu.dot_dimension_numbers<[1], [0], [0], [1], [0, 0, 1, 1], [], []>} : vector<128x128xbf16>, vector<128x128xbf16>, vector<128x128xf32> -> vector<128x128xf32>
    %12 = vector.shape_cast %11 : vector<128x128xf32> to vector<8x16x128xf32>
    %13 = arith.truncf %12 : vector<8x16x128xf32> to vector<8x16x128xbf16>
    "tpu.trace_start"() <{level = 10 : i32, message = "bjk,bkd->bjd"}> : () -> ()
    %cst_12 = arith.constant dense<0.000000e+00> : vector<8x16x128xf32>
    %14 = tpu.matmul %4, %13, %cst_12 {dimension_numbers = #tpu.dot_dimension_numbers<[2], [1], [1], [2], [0, 0, 0, 1, 1, 2], [0], [0]>} : vector<8x16x16xbf16>, vector<8x16x128xbf16>, vector<8x16x128xf32> -> vector<8x16x128xf32>
    "tpu.trace_stop"() : () -> ()
    %15 = vector.shape_cast %14 : vector<8x16x128xf32> to vector<128x128xf32>
    %16 = vector.broadcast %7 : vector<1x128xf32> to vector<128x128xf32>
    %17 = arith.addf %15, %16 : vector<128x128xf32>
    %cst_13 = arith.constant dense<0.000000e+00> : vector<128xf32>
    %18 = vector.multi_reduction <add>, %17, %cst_13 [0] : vector<128x128xf32> to vector<128xf32>
    %19 = vector.shape_cast %18 : vector<128xf32> to vector<1x128xf32>
    %cst_14 = arith.constant 1.280000e+02 : f32
    %20 = vector.broadcast %cst_14 : f32 to vector<1x128xf32>
    %21 = arith.divf %19, %20 : vector<1x128xf32>
    %22 = vector.broadcast %21 : vector<1x128xf32> to vector<128x128xf32>
    %23 = arith.subf %17, %22 : vector<128x128xf32>
    %24 = arith.mulf %23, %23 : vector<128x128xf32>
    %cst_15 = arith.constant dense<0.000000e+00> : vector<128xf32>
    %25 = vector.multi_reduction <add>, %24, %cst_15 [0] : vector<128x128xf32> to vector<128xf32>
    %26 = vector.shape_cast %25 : vector<128xf32> to vector<1x128xf32>
    %cst_16 = arith.constant 1.280000e+02 : f32
    %27 = vector.broadcast %cst_16 : f32 to vector<1x128xf32>
    %28 = arith.divf %26, %27 : vector<1x128xf32>
    %cst_17 = arith.constant 9.99999974E-6 : f32
    %29 = vector.broadcast %cst_17 : f32 to vector<1x128xf32>
    %30 = arith.addf %28, %29 : vector<1x128xf32>
    %31 = math.rsqrt %30 : vector<1x128xf32>
    %32 = vector.broadcast %31 : vector<1x128xf32> to vector<128x128xf32>
    %33 = arith.mulf %23, %32 : vector<128x128xf32>
    %34 = vector.broadcast %8 : vector<1x128xf32> to vector<128x128xf32>
    %35 = arith.mulf %33, %34 : vector<128x128xf32>
    %36 = vector.broadcast %9 : vector<1x128xf32> to vector<128x128xf32>
    %37 = arith.addf %35, %36 : vector<128x128xf32>
    %cst_18 = arith.constant 0.000000e+00 : f32
    %38 = vector.broadcast %cst_18 : f32 to vector<128x128xf32>
    %39 = arith.maximumf %37, %38 : vector<128x128xf32>
    %c0_19 = arith.constant 0 : index
    %c0_20 = arith.constant 0 : index
    %40 = vector.load %arg6[%c0_19, %c0_20] : memref<128x128xbf16, #tpu.memory_space<vmem>>, vector<128x128xbf16>
    %c0_21 = arith.constant 0 : index
    %c0_22 = arith.constant 0 : index
    %41 = vector.load %arg7[%c0_21, %c0_22] : memref<1x128xf32, #tpu.memory_space<vmem>>, vector<1x128xf32>
    %c0_23 = arith.constant 0 : index
    %c0_24 = arith.constant 0 : index
    %42 = vector.load %arg8[%c0_23, %c0_24] : memref<1x128xf32, #tpu.memory_space<vmem>>, vector<1x128xf32>
    %c0_25 = arith.constant 0 : index
    %c0_26 = arith.constant 0 : index
    %43 = vector.load %arg9[%c0_25, %c0_26] : memref<1x128xf32, #tpu.memory_space<vmem>>, vector<1x128xf32>
    %44 = arith.truncf %39 : vector<128x128xf32> to vector<128x128xbf16>
    %cst_27 = arith.constant dense<0.000000e+00> : vector<128x128xf32>
    %45 = tpu.matmul %44, %40, %cst_27 {dimension_numbers = #tpu.dot_dimension_numbers<[1], [0], [0], [1], [0, 0, 1, 1], [], []>} : vector<128x128xbf16>, vector<128x128xbf16>, vector<128x128xf32> -> vector<128x128xf32>
    %46 = vector.shape_cast %45 : vector<128x128xf32> to vector<8x16x128xf32>
    %47 = arith.truncf %46 : vector<8x16x128xf32> to vector<8x16x128xbf16>
    "tpu.trace_start"() <{level = 10 : i32, message = "bjk,bkd->bjd"}> : () -> ()
    %cst_28 = arith.constant dense<0.000000e+00> : vector<8x16x128xf32>
    %48 = tpu.matmul %4, %47, %cst_28 {dimension_numbers = #tpu.dot_dimension_numbers<[2], [1], [1], [2], [0, 0, 0, 1, 1, 2], [0], [0]>} : vector<8x16x16xbf16>, vector<8x16x128xbf16>, vector<8x16x128xf32> -> vector<8x16x128xf32>
    "tpu.trace_stop"() : () -> ()
    %49 = vector.shape_cast %48 : vector<8x16x128xf32> to vector<128x128xf32>
    %50 = vector.broadcast %41 : vector<1x128xf32> to vector<128x128xf32>
    %51 = arith.addf %49, %50 : vector<128x128xf32>
    %cst_29 = arith.constant dense<0.000000e+00> : vector<128xf32>
    %52 = vector.multi_reduction <add>, %51, %cst_29 [0] : vector<128x128xf32> to vector<128xf32>
    %53 = vector.shape_cast %52 : vector<128xf32> to vector<1x128xf32>
    %cst_30 = arith.constant 1.280000e+02 : f32
    %54 = vector.broadcast %cst_30 : f32 to vector<1x128xf32>
    %55 = arith.divf %53, %54 : vector<1x128xf32>
    %56 = vector.broadcast %55 : vector<1x128xf32> to vector<128x128xf32>
    %57 = arith.subf %51, %56 : vector<128x128xf32>
    %58 = arith.mulf %57, %57 : vector<128x128xf32>
    %cst_31 = arith.constant dense<0.000000e+00> : vector<128xf32>
    %59 = vector.multi_reduction <add>, %58, %cst_31 [0] : vector<128x128xf32> to vector<128xf32>
    %60 = vector.shape_cast %59 : vector<128xf32> to vector<1x128xf32>
    %cst_32 = arith.constant 1.280000e+02 : f32
    %61 = vector.broadcast %cst_32 : f32 to vector<1x128xf32>
    %62 = arith.divf %60, %61 : vector<1x128xf32>
    %cst_33 = arith.constant 9.99999974E-6 : f32
    %63 = vector.broadcast %cst_33 : f32 to vector<1x128xf32>
    %64 = arith.addf %62, %63 : vector<1x128xf32>
    %65 = math.rsqrt %64 : vector<1x128xf32>
    %66 = vector.broadcast %65 : vector<1x128xf32> to vector<128x128xf32>
    %67 = arith.mulf %57, %66 : vector<128x128xf32>
    %68 = vector.broadcast %42 : vector<1x128xf32> to vector<128x128xf32>
    %69 = arith.mulf %67, %68 : vector<128x128xf32>
    %70 = vector.broadcast %43 : vector<1x128xf32> to vector<128x128xf32>
    %71 = arith.addf %69, %70 : vector<128x128xf32>
    %cst_34 = arith.constant 0.000000e+00 : f32
    %72 = vector.broadcast %cst_34 : f32 to vector<128x128xf32>
    %73 = arith.maximumf %71, %72 : vector<128x128xf32>
    %74 = arith.addf %73, %5 : vector<128x128xf32>
    %cst_35 = arith.constant 0.000000e+00 : f32
    %75 = vector.broadcast %cst_35 : f32 to vector<128x128xf32>
    %76 = arith.maximumf %74, %75 : vector<128x128xf32>
    %77 = vector.shape_cast %76 : vector<128x128xf32> to vector<8x16x128xf32>
    %c0_36 = arith.constant 0 : index
    %c0_37 = arith.constant 0 : index
    %c0_38 = arith.constant 0 : index
    %78 = vector.load %arg10[%c0_36, %c0_37, %c0_38] : memref<8x16x128xf32, #tpu.memory_space<vmem>>, vector<8x16x128xf32>
    tpu.vector_store %arg10[%c0_36, %c0_37, %c0_38], %77 {strides = array<i32>} : memref<8x16x128xf32, #tpu.memory_space<vmem>>, vector<8x16x128xf32>,
    return
  }
}

</mosaic_0001>

<llo_original>
// kernel: tpu_custom_call.1
$region0: #{tpu_custom_call.1}
  #allocation0 [shape = 'u32[]', space=smem, size = 0x4, offset = 0x4, fixed_abs, tag = 'smem constant byte address 0x4 - core index']
  #allocation1 [shape = 'u32[144,128]{1,0:T(1,128)}', space=vmem, size = 0x12000, scoped, tag = 'internal scratch']
  %s0 = inlined_call_operand.hbm [shape: f32[8,16,128], index: 0, kind: input, shape index: {}]
  %s1 = inlined_call_operand.hbm [shape: bf16[16,16], index: 1, kind: input, shape index: {}]
  %s2 = inlined_call_operand.hbm [shape: bf16[128,128], index: 2, kind: input, shape index: {}]
  %s3 = inlined_call_operand.vmem [shape: f32[1,128], index: 3, kind: input, shape index: {}]
  %s4 = inlined_call_operand.vmem [shape: f32[1,128], index: 4, kind: input, shape index: {}]
  %s5 = inlined_call_operand.vmem [shape: f32[1,128], index: 5, kind: input, shape index: {}]
  %s6 = inlined_call_operand.hbm [shape: bf16[128,128], index: 6, kind: input, shape index: {}]
  %s7 = inlined_call_operand.vmem [shape: f32[1,128], index: 7, kind: input, shape index: {}]
  %s8 = inlined_call_operand.vmem [shape: f32[1,128], index: 8, kind: input, shape index: {}]
  %s9 = inlined_call_operand.vmem [shape: f32[1,128], index: 9, kind: input, shape index: {}]
  %s10 = inlined_call_operand.hbm [shape: f32[8,16,128], index: 10, kind: output, shape index: {}]
  %s11 = sld [smem:[#allocation0]]
  $region66: #{tpu_custom_call.1} parent=0
    _
  %s13 = ssub.s32 1, %s11
  %s14 = scalar_select 0, %s13, %s11
  $region1: #{tpu_custom_call.1} parent=0
    #allocation2 [shape = 'u8[65536]{0}', space=vmem, size = 0x10000, scoped, tag = 'input window, operand 0, single buffered']
    #allocation3 [shape = 's32[1]{0}', space=sflag, size = 0x4, scoped, tag = 'scoped memory for tpu_custom_call.1']
    #allocation4 [shape = 's32[1]{0}', space=sflag, size = 0x4, scoped, tag = 'scoped memory for tpu_custom_call.1']
    #allocation5 [shape = 'u8[4096]{0}', space=vmem, size = 0x1000, scoped, tag = 'input window, operand 1, single buffered']
    #allocation6 [shape = 's32[1]{0}', space=sflag, size = 0x4, scoped, tag = 'scoped memory for tpu_custom_call.1']
    #allocation7 [shape = 'u8[32768]{0}', space=vmem, size = 0x8000, scoped, tag = 'input window, operand 2, single buffered']
    #allocation8 [shape = 'u8[32768]{0}', space=vmem, size = 0x8000, scoped, tag = 'input window, operand 6, single buffered']
    #allocation9 [shape = 's32[1]{0}', space=sflag, size = 0x4, scoped, tag = 'scoped memory for tpu_custom_call.1']
    #allocation10 [shape = 'u8[65536]{0}', space=vmem, size = 0x10000, scoped, tag = 'output window, operand 0, single buffered']
    %15 = vsyncpa [#allocation3], 0
    %16 = vsyncpa [#allocation6], 0
    %17 = vsyncpa [#allocation9], 0
    %18 = vsyncpa [#allocation4], 0
    // Predicated region
    $region2: #{tpu_custom_call.1} parent=1 // pred_check
      _
    $region3: #{tpu_custom_call.1} parent=1 // pred_check_branch
      %20 = sbr.rel (0) target = $region5
    $region4: #{tpu_custom_call.1} parent=1 // pred_region
      %s22 = ssub.s32 2048, 2048
      %23 = vsyncadd [#allocation3], %s22
      %s24 = sshll.u32 [#allocation2], 4
      %s25 = int_to_ptr.vmem [resolvable:$true] %s24
      %30 = dma.hbm_to_vmem [thread:$0]  %s0, 2048, %s25, [#allocation3], 128, 128, 8
    $region5: #{tpu_custom_call.1} parent=1 // pred_fallthru
      _
    // Predicated region
    $region6: #{tpu_custom_call.1} parent=1 // pred_check
      _
    $region7: #{tpu_custom_call.1} parent=1 // pred_check_branch
      %32 = sbr.rel (0) target = $region9
    $region8: #{tpu_custom_call.1} parent=1 // pred_region
      %s34 = ssub.s32 128, 128
      %35 = vsyncadd [#allocation6], %s34
      %s36 = sshll.u32 [#allocation5], 4
      %s37 = int_to_ptr.vmem [resolvable:$true] %s36
      %42 = dma.hbm_to_vmem [thread:$0]  %s1, 128, %s37, [#allocation6], 64, 64, 4
    $region9: #{tpu_custom_call.1} parent=1 // pred_fallthru
      _
    // Predicated region
    $region10: #{tpu_custom_call.1} parent=1 // pred_check
      _
    $region11: #{tpu_custom_call.1} parent=1 // pred_check_branch
      %44 = sbr.rel (0) target = $region13
    $region12: #{tpu_custom_call.1} parent=1 // pred_region
      %s46 = ssub.s32 1024, 1024
      %47 = vsyncadd [#allocation6], %s46
      %s48 = sshll.u32 [#allocation7], 4
      %s49 = int_to_ptr.vmem [resolvable:$true] %s48
      %54 = dma.hbm_to_vmem [thread:$0]  %s2, 1024, %s49, [#allocation6], 64, 64, 4
    $region13: #{tpu_custom_call.1} parent=1 // pred_fallthru
      _
    // Predicated region
    $region14: #{tpu_custom_call.1} parent=1 // pred_check
      _
    $region15: #{tpu_custom_call.1} parent=1 // pred_check_branch
      %56 = sbr.rel (0) target = $region17
    $region16: #{tpu_custom_call.1} parent=1 // pred_region
      _
    $region17: #{tpu_custom_call.1} parent=1 // pred_fallthru
      _
    // Predicated region
    $region18: #{tpu_custom_call.1} parent=1 // pred_check
      _
    $region19: #{tpu_custom_call.1} parent=1 // pred_check_branch
      %58 = sbr.rel (0) target = $region21
    $region20: #{tpu_custom_call.1} parent=1 // pred_region
      _
    $region21: #{tpu_custom_call.1} parent=1 // pred_fallthru
      _
    // Predicated region
    $region22: #{tpu_custom_call.1} parent=1 // pred_check
      _
    $region23: #{tpu_custom_call.1} parent=1 // pred_check_branch
      %60 = sbr.rel (0) target = $region25
    $region24: #{tpu_custom_call.1} parent=1 // pred_region
      _
    $region25: #{tpu_custom_call.1} parent=1 // pred_fallthru
      _
    // Predicated region
    $region26: #{tpu_custom_call.1} parent=1 // pred_check
      _
    $region27: #{tpu_custom_call.1} parent=1 // pred_check_branch
      %62 = sbr.rel (0) target = $region29
    $region28: #{tpu_custom_call.1} parent=1 // pred_region
      %s64 = ssub.s32 1024, 1024
      %65 = vsyncadd [#allocation9], %s64
      %s66 = sshll.u32 [#allocation8], 4
      %s67 = int_to_ptr.vmem [resolvable:$true] %s66
      %72 = dma.hbm_to_vmem [thread:$0]  %s6, 1024, %s67, [#allocation9], 64, 64, 4
    $region29: #{tpu_custom_call.1} parent=1 // pred_fallthru
      _
    // Predicated region
    $region30: #{tpu_custom_call.1} parent=1 // pred_check
      _
    $region31: #{tpu_custom_call.1} parent=1 // pred_check_branch
      %74 = sbr.rel (0) target = $region33
    $region32: #{tpu_custom_call.1} parent=1 // pred_region
      _
    $region33: #{tpu_custom_call.1} parent=1 // pred_fallthru
      _
    // Predicated region
    $region34: #{tpu_custom_call.1} parent=1 // pred_check
      _
    $region35: #{tpu_custom_call.1} parent=1 // pred_check_branch
      %76 = sbr.rel (0) target = $region37
    $region36: #{tpu_custom_call.1} parent=1 // pred_region
      _
    $region37: #{tpu_custom_call.1} parent=1 // pred_fallthru
      _
    // Predicated region
    $region38: #{tpu_custom_call.1} parent=1 // pred_check
      _
    $region39: #{tpu_custom_call.1} parent=1 // pred_check_branch
      %78 = sbr.rel (0) target = $region41
    $region40: #{tpu_custom_call.1} parent=1 // pred_region
      _
    $region41: #{tpu_custom_call.1} parent=1 // pred_fallthru
      _
    // Predicated region
    $region42: #{tpu_custom_call.1} parent=1 // pred_check
      _
    $region43: #{tpu_custom_call.1} parent=1 // pred_check_branch
      %80 = sbr.rel (0) target = $region45
    $region44: #{tpu_custom_call.1} parent=1 // pred_region
      %81 = dma.done [#allocation3], 2048
    $region45: #{tpu_custom_call.1} parent=1 // pred_fallthru
      _
    // Predicated region
    $region46: #{tpu_custom_call.1} parent=1 // pred_check
      _
    $region47: #{tpu_custom_call.1} parent=1 // pred_check_branch
      %83 = sbr.rel (0) target = $region49
    $region48: #{tpu_custom_call.1} parent=1 // pred_region
      %84 = dma.done [#allocation6], 128
    $region49: #{tpu_custom_call.1} parent=1 // pred_fallthru
      _
    // Predicated region
    $region50: #{tpu_custom_call.1} parent=1 // pred_check
      _
    $region51: #{tpu_custom_call.1} parent=1 // pred_check_branch
      %86 = sbr.rel (0) target = $region53
    $region52: #{tpu_custom_call.1} parent=1 // pred_region
      %87 = dma.done [#allocation6], 1024
    $region53: #{tpu_custom_call.1} parent=1 // pred_fallthru
      _
    // Predicated region
    $region54: #{tpu_custom_call.1} parent=1 // pred_check
      _
    $region55: #{tpu_custom_call.1} parent=1 // pred_check_branch
      %89 = sbr.rel (0) target = $region57
    $region56: #{tpu_custom_call.1} parent=1 // pred_region
      %90 = dma.done [#allocation9], 1024
    $region57: #{tpu_custom_call.1} parent=1 // pred_fallthru
      _
    %v92 = vld [vmem:[#allocation2] sm:$0xff]
    %v93 = vld [vmem:[#allocation2 + $0x8] sm:$0xff]
    %v94 = vld [vmem:[#allocation2 + $0x10] sm:$0xff]
    %v95 = vld [vmem:[#allocation2 + $0x18] sm:$0xff]
    %v96 = vld [vmem:[#allocation2 + $0x20] sm:$0xff]
    %v97 = vld [vmem:[#allocation2 + $0x28] sm:$0xff]
    %v98 = vld [vmem:[#allocation2 + $0x30] sm:$0xff]
    %v99 = vld [vmem:[#allocation2 + $0x38] sm:$0xff]
    %v100 = vld [vmem:[#allocation2 + $0x40] sm:$0xff]
    %v101 = vld [vmem:[#allocation2 + $0x48] sm:$0xff]
    %v102 = vld [vmem:[#allocation2 + $0x50] sm:$0xff]
    %v103 = vld [vmem:[#allocation2 + $0x58] sm:$0xff]
    %v104 = vld [vmem:[#allocation2 + $0x60] sm:$0xff]
    %v105 = vld [vmem:[#allocation2 + $0x68] sm:$0xff]
    %v106 = vld [vmem:[#allocation2 + $0x70] sm:$0xff]
    %v107 = vld [vmem:[#allocation2 + $0x78] sm:$0xff]
    %v108 = vld [vmem:[#allocation5] sm:$0xf]
    %v109 = vld [vmem:[#allocation5 + $0x4] sm:$0xf]
    %v110 = vld [vmem:[#allocation7] sm:$0xf]
    %v111 = vld [vmem:[#allocation7 + $0x4] sm:$0xf]
    %v112 = vld [vmem:[#allocation7 + $0x8] sm:$0xf]
    %v113 = vld [vmem:[#allocation7 + $0xc] sm:$0xf]
    %v114 = vld [vmem:[#allocation7 + $0x10] sm:$0xf]
    %v115 = vld [vmem:[#allocation7 + $0x14] sm:$0xf]
    %v116 = vld [vmem:[#allocation7 + $0x18] sm:$0xf]
    %v117 = vld [vmem:[#allocation7 + $0x1c] sm:$0xf]
    %v118 = vld [vmem:[#allocation7 + $0x20] sm:$0xf]
    %v119 = vld [vmem:[#allocation7 + $0x24] sm:$0xf]
    %v120 = vld [vmem:[#allocation7 + $0x28] sm:$0xf]
    %v121 = vld [vmem:[#allocation7 + $0x2c] sm:$0xf]
    %v122 = vld [vmem:[#allocation7 + $0x30] sm:$0xf]
    %v123 = vld [vmem:[#allocation7 + $0x34] sm:$0xf]
    %v124 = vld [vmem:[#allocation7 + $0x38] sm:$0xf]
    %v125 = vld [vmem:[#allocation7 + $0x3c] sm:$0xf]
    %v126 = vld [vmem:[%s3] sm:$0x1]
    %v127 = vld [vmem:[%s4] sm:$0x1]
    %v128 = vld [vmem:[%s5] sm:$0x1]
    %v129 = vpack.c.bf16 %v93, %v92
    %v130 = vpack.c.bf16 %v95, %v94
    %v131 = vpack.c.bf16 %v97, %v96
    %v132 = vpack.c.bf16 %v99, %v98
    %v133 = vpack.c.bf16 %v101, %v100
    %v134 = vpack.c.bf16 %v103, %v102
    %v135 = vpack.c.bf16 %v105, %v104
    %v136 = vpack.c.bf16 %v107, %v106
    %v153 = vunpack.c.l.b16 %v110
    %v154 = vunpack.c.l.b16 %v111
    %v155 = vunpack.c.l.b16 %v112
    %v156 = vunpack.c.l.b16 %v113
    %v157 = vunpack.c.l.b16 %v114
    %v158 = vunpack.c.l.b16 %v115
    %v159 = vunpack.c.l.b16 %v116
    %v160 = vunpack.c.l.b16 %v117
    %v161 = vunpack.c.l.b16 %v118
    %v162 = vunpack.c.l.b16 %v119
    %v163 = vunpack.c.l.b16 %v120
    %v164 = vunpack.c.l.b16 %v121
    %v165 = vunpack.c.l.b16 %v122
    %v166 = vunpack.c.l.b16 %v123
    %v167 = vunpack.c.l.b16 %v124
    %v168 = vunpack.c.l.b16 %v125
    %v169 = vpack.c.b16 %v154, %v153
    %v170 = vpack.c.b16 %v156, %v155
    %v171 = vpack.c.b16 %v158, %v157
    %v172 = vpack.c.b16 %v160, %v159
    %v173 = vpack.c.b16 %v162, %v161
    %v174 = vpack.c.b16 %v164, %v163
    %v175 = vpack.c.b16 %v166, %v165
    %v176 = vpack.c.b16 %v168, %v167
    %185 = vmatprep.subr.bf16.mxu0 0
    %186 = vmatpush1.bf16.msra.mxu0 %v176
    %187 = vmatprep.subr.bf16.mxu0 0
    %188 = vmatpush1.bf16.msra.mxu0 %v175
    %189 = vmatprep.subr.bf16.mxu0 0
    %190 = vmatpush1.bf16.msra.mxu0 %v174
    %191 = vmatprep.subr.bf16.mxu0 0
    %192 = vmatpush1.bf16.msra.mxu0 %v173
    %193 = vmatprep.subr.bf16.mxu0 0
    %194 = vmatpush1.bf16.msra.mxu0 %v172
    %195 = vmatprep.subr.bf16.mxu0 0
    %196 = vmatpush1.bf16.msra.mxu0 %v171
    %197 = vmatprep.subr.bf16.mxu0 0
    %198 = vmatpush1.bf16.msra.mxu0 %v170
    %199 = vmatprep.subr.bf16.mxu0 0
    %200 = vmatpush1.bf16.msra.mxu0 %v169
    %201 = vmatprep.subr.bf16.mxu0 0
    %202 = vmatpush2.bf16.msra.mxu0 0
    %203 = vmatprep.subr.bf16.mxu0 0
    %204 = vmatpush2.bf16.msra.mxu0 0
    %205 = vmatprep.subr.bf16.mxu0 0
    %206 = vmatpush2.bf16.msra.mxu0 0
    %207 = vmatprep.subr.bf16.mxu0 0
    %208 = vmatpush2.bf16.msra.mxu0 0
    %209 = vmatprep.subr.bf16.mxu0 0
    %210 = vmatpush2.bf16.msra.mxu0 0
    %211 = vmatprep.subr.bf16.mxu0 0
    %212 = vmatpush2.bf16.msra.mxu0 0
    %213 = vmatprep.subr.bf16.mxu0 0
    %214 = vmatpush2.bf16.msra.mxu0 0
    %215 = vmatprep.subr.bf16.mxu0 0
    %216 = vmatpush2.bf16.msra.mxu0 0
    %217 = vmatprep.mubr.bf16.mxu0 0
    %218 = vmatmul.mubr.bf16.gmra.mxu0 %v129
    %v219 = vpop.f32.mrf.mxu0
    %v220 = vadd.f32 0.0, %v219
    %v221 = vpop.f32.mrf.mxu0
    %v222 = vpop.f32.mrf.mxu0
    %v223 = vadd.f32 0.0, %v222
    %v224 = vpop.f32.mrf.mxu0
    %225 = vmatprep.mubr.bf16.mxu0 0
    %226 = vmatmul.mubr.bf16.gmra.mxu0 %v130
    %v227 = vpop.f32.mrf.mxu0
    %v228 = vadd.f32 0.0, %v227
    %v229 = vpop.f32.mrf.mxu0
    %v230 = vpop.f32.mrf.mxu0
    %v231 = vadd.f32 0.0, %v230
    %v232 = vpop.f32.mrf.mxu0
    %233 = vmatprep.mubr.bf16.mxu0 0
    %234 = vmatmul.mubr.bf16.gmra.mxu0 %v131
    %v235 = vpop.f32.mrf.mxu0
    %v236 = vadd.f32 0.0, %v235
    %v237 = vpop.f32.mrf.mxu0
    %v238 = vpop.f32.mrf.mxu0
    %v239 = vadd.f32 0.0, %v238
    %v240 = vpop.f32.mrf.mxu0
    %241 = vmatprep.mubr.bf16.mxu0 0
    %242 = vmatmul.mubr.bf16.gmra.mxu0 %v132
    %v243 = vpop.f32.mrf.mxu0
    %v244 = vadd.f32 0.0, %v243
    %v245 = vpop.f32.mrf.mxu0
    %v246 = vpop.f32.mrf.mxu0
    %v247 = vadd.f32 0.0, %v246
    %v248 = vpop.f32.mrf.mxu0
    %249 = vmatprep.mubr.bf16.mxu0 0
    %250 = vmatmul.mubr.bf16.gmra.mxu0 %v133
    %v251 = vpop.f32.mrf.mxu0
    %v252 = vadd.f32 0.0, %v251
    %v253 = vpop.f32.mrf.mxu0
    %v254 = vpop.f32.mrf.mxu0
    %v255 = vadd.f32 0.0, %v254
    %v256 = vpop.f32.mrf.mxu0
    %257 = vmatprep.mubr.bf16.mxu0 0
    %258 = vmatmul.mubr.bf16.gmra.mxu0 %v134
    %v259 = vpop.f32.mrf.mxu0
    %v260 = vadd.f32 0.0, %v259
    %v261 = vpop.f32.mrf.mxu0
    %v262 = vpop.f32.mrf.mxu0
    %v263 = vadd.f32 0.0, %v262
    %v264 = vpop.f32.mrf.mxu0
    %265 = vmatprep.mubr.bf16.mxu0 0
    %266 = vmatmul.mubr.bf16.gmra.mxu0 %v135
    %v267 = vpop.f32.mrf.mxu0
    %v268 = vadd.f32 0.0, %v267
    %v269 = vpop.f32.mrf.mxu0
    %v270 = vpop.f32.mrf.mxu0
    %v271 = vadd.f32 0.0, %v270
    %v272 = vpop.f32.mrf.mxu0
    %273 = vmatprep.mubr.bf16.mxu0 0
    %274 = vmatmul.mubr.bf16.gmra.mxu0 %v136
    %v275 = vpop.f32.mrf.mxu0
    %v276 = vadd.f32 0.0, %v275
    %v277 = vpop.f32.mrf.mxu0
    %v278 = vpop.f32.mrf.mxu0
    %v279 = vadd.f32 0.0, %v278
    %v280 = vpop.f32.mrf.mxu0
    %281 = vdwg.mxu0
    %v282 = vpack.c.bf16 %v223, %v220
    %v283 = vpack.c.bf16 %v231, %v228
    %v284 = vpack.c.bf16 %v239, %v236
    %v285 = vpack.c.bf16 %v247, %v244
    %v286 = vpack.c.bf16 %v255, %v252
    %v287 = vpack.c.bf16 %v263, %v260
    %v288 = vpack.c.bf16 %v271, %v268
    %v289 = vpack.c.bf16 %v279, %v276
    %v292 = vunpack.c.l.b16 %v108
    %v293 = vunpack.c.l.b16 %v109
    %v294 = vpack.c.b16 %v293, %v292
    %vm295 = vcmask 130048
    %v297 = vsel %vm295, %v294, 0
    %299 = vmatprep.subr.bf16.mxu0 0
    %300 = vmatpush1.bf16.msra.mxu0 0
    %301 = vmatprep.subr.bf16.mxu0 0
    %302 = vmatpush1.bf16.msra.mxu0 0
    %303 = vmatprep.subr.bf16.mxu0 0
    %304 = vmatpush1.bf16.msra.mxu0 0
    %305 = vmatprep.subr.bf16.mxu0 0
    %306 = vmatpush1.bf16.msra.mxu0 0
    %307 = vmatprep.subr.bf16.mxu0 0
    %308 = vmatpush1.bf16.msra.mxu0 0
    %309 = vmatprep.subr.bf16.mxu0 0
    %310 = vmatpush1.bf16.msra.mxu0 0
    %311 = vmatprep.subr.bf16.mxu0 0
    %312 = vmatpush1.bf16.msra.mxu0 0
    %313 = vmatprep.subr.bf16.mxu0 0
    %314 = vmatpush1.bf16.msra.mxu0 %v282
    %315 = vmatprep.subr.bf16.mxu0 0
    %316 = vmatpush2.bf16.msra.mxu0 0
    %317 = vmatprep.subr.bf16.mxu0 0
    %318 = vmatpush2.bf16.msra.mxu0 0
    %319 = vmatprep.subr.bf16.mxu0 0
    %320 = vmatpush2.bf16.msra.mxu0 0
    %321 = vmatprep.subr.bf16.mxu0 0
    %322 = vmatpush2.bf16.msra.mxu0 0
    %323 = vmatprep.subr.bf16.mxu0 0
    %324 = vmatpush2.bf16.msra.mxu0 0
    %325 = vmatprep.subr.bf16.mxu0 0
    %326 = vmatpush2.bf16.msra.mxu0 0
    %327 = vmatprep.subr.bf16.mxu0 0
    %328 = vmatpush2.bf16.msra.mxu0 0
    %329 = vmatprep.subr.bf16.mxu0 0
    %330 = vmatpush2.bf16.msra.mxu0 0
    %331 = vmatprep.mubr.bf16.mxu0 0
    %332 = vmatmul.mubr.bf16.gmra.mxu0 %v297
    %v333 = vpop.f32.mrf.mxu0
    %v334 = vadd.f32 0.0, %v333
    %v335 = vpop.f32.mrf.mxu0
    %v336 = vpop.f32.mrf.mxu0
    %v337 = vadd.f32 0.0, %v336
    %v338 = vpop.f32.mrf.mxu0
    %339 = vdwg.mxu0
    %340 = vmatprep.subr.bf16.mxu0 0
    %341 = vmatpush1.bf16.msra.mxu0 0
    %342 = vmatprep.subr.bf16.mxu0 0
    %343 = vmatpush1.bf16.msra.mxu0 0
    %344 = vmatprep.subr.bf16.mxu0 0
    %345 = vmatpush1.bf16.msra.mxu0 0
    %346 = vmatprep.subr.bf16.mxu0 0
    %347 = vmatpush1.bf16.msra.mxu0 0
    %348 = vmatprep.subr.bf16.mxu0 0
    %349 = vmatpush1.bf16.msra.mxu0 0
    %350 = vmatprep.subr.bf16.mxu0 0
    %351 = vmatpush1.bf16.msra.mxu0 0
    %352 = vmatprep.subr.bf16.mxu0 0
    %353 = vmatpush1.bf16.msra.mxu0 0
    %354 = vmatprep.subr.bf16.mxu0 0
    %355 = vmatpush1.bf16.msra.mxu0 %v283
    %356 = vmatprep.subr.bf16.mxu0 0
    %357 = vmatpush2.bf16.msra.mxu0 0
    %358 = vmatprep.subr.bf16.mxu0 0
    %359 = vmatpush2.bf16.msra.mxu0 0
    %360 = vmatprep.subr.bf16.mxu0 0
    %361 = vmatpush2.bf16.msra.mxu0 0
    %362 = vmatprep.subr.bf16.mxu0 0
    %363 = vmatpush2.bf16.msra.mxu0 0
    %364 = vmatprep.subr.bf16.mxu0 0
    %365 = vmatpush2.bf16.msra.mxu0 0
    %366 = vmatprep.subr.bf16.mxu0 0
    %367 = vmatpush2.bf16.msra.mxu0 0
    %368 = vmatprep.subr.bf16.mxu0 0
    %369 = vmatpush2.bf16.msra.mxu0 0
    %370 = vmatprep.subr.bf16.mxu0 0
    %371 = vmatpush2.bf16.msra.mxu0 0
    %372 = vmatprep.mubr.bf16.mxu0 0
    %373 = vmatmul.mubr.bf16.gmra.mxu0 %v297
    %v374 = vpop.f32.mrf.mxu0
    %v375 = vadd.f32 0.0, %v374
    %v376 = vpop.f32.mrf.mxu0
    %v377 = vpop.f32.mrf.mxu0
    %v378 = vadd.f32 0.0, %v377
    %v379 = vpop.f32.mrf.mxu0
    %380 = vdwg.mxu0
    %381 = vmatprep.subr.bf16.mxu0 0
    %382 = vmatpush1.bf16.msra.mxu0 0
    %383 = vmatprep.subr.bf16.mxu0 0
    %384 = vmatpush1.bf16.msra.mxu0 0
    %385 = vmatprep.subr.bf16.mxu0 0
    %386 = vmatpush1.bf16.msra.mxu0 0
    %387 = vmatprep.subr.bf16.mxu0 0
    %388 = vmatpush1.bf16.msra.mxu0 0
    %389 = vmatprep.subr.bf16.mxu0 0
    %390 = vmatpush1.bf16.msra.mxu0 0
    %391 = vmatprep.subr.bf16.mxu0 0
    %392 = vmatpush1.bf16.msra.mxu0 0
    %393 = vmatprep.subr.bf16.mxu0 0
    %394 = vmatpush1.bf16.msra.mxu0 0
    %395 = vmatprep.subr.bf16.mxu0 0
    %396 = vmatpush1.bf16.msra.mxu0 %v284
    %397 = vmatprep.subr.bf16.mxu0 0
    %398 = vmatpush2.bf16.msra.mxu0 0
    %399 = vmatprep.subr.bf16.mxu0 0
    %400 = vmatpush2.bf16.msra.mxu0 0
    %401 = vmatprep.subr.bf16.mxu0 0
    %402 = vmatpush2.bf16.msra.mxu0 0
    %403 = vmatprep.subr.bf16.mxu0 0
    %404 = vmatpush2.bf16.msra.mxu0 0
    %405 = vmatprep.subr.bf16.mxu0 0
    %406 = vmatpush2.bf16.msra.mxu0 0
    %407 = vmatprep.subr.bf16.mxu0 0
    %408 = vmatpush2.bf16.msra.mxu0 0
    %409 = vmatprep.subr.bf16.mxu0 0
    %410 = vmatpush2.bf16.msra.mxu0 0
    %411 = vmatprep.subr.bf16.mxu0 0
    %412 = vmatpush2.bf16.msra.mxu0 0
    %413 = vmatprep.mubr.bf16.mxu0 0
    %414 = vmatmul.mubr.bf16.gmra.mxu0 %v297
    %v415 = vpop.f32.mrf.mxu0
    %v416 = vadd.f32 0.0, %v415
    %v417 = vpop.f32.mrf.mxu0
    %v418 = vpop.f32.mrf.mxu0
    %v419 = vadd.f32 0.0, %v418
    %v420 = vpop.f32.mrf.mxu0
    %421 = vdwg.mxu0
    %422 = vmatprep.subr.bf16.mxu0 0
    %423 = vmatpush1.bf16.msra.mxu0 0
    %424 = vmatprep.subr.bf16.mxu0 0
    %425 = vmatpush1.bf16.msra.mxu0 0
    %426 = vmatprep.subr.bf16.mxu0 0
    %427 = vmatpush1.bf16.msra.mxu0 0
    %428 = vmatprep.subr.bf16.mxu0 0
    %429 = vmatpush1.bf16.msra.mxu0 0
    %430 = vmatprep.subr.bf16.mxu0 0
    %431 = vmatpush1.bf16.msra.mxu0 0
    %432 = vmatprep.subr.bf16.mxu0 0
    %433 = vmatpush1.bf16.msra.mxu0 0
    %434 = vmatprep.subr.bf16.mxu0 0
    %435 = vmatpush1.bf16.msra.mxu0 0
    %436 = vmatprep.subr.bf16.mxu0 0
    %437 = vmatpush1.bf16.msra.mxu0 %v285
    %438 = vmatprep.subr.bf16.mxu0 0
    %439 = vmatpush2.bf16.msra.mxu0 0
    %440 = vmatprep.subr.bf16.mxu0 0
    %441 = vmatpush2.bf16.msra.mxu0 0
    %442 = vmatprep.subr.bf16.mxu0 0
    %443 = vmatpush2.bf16.msra.mxu0 0
    %444 = vmatprep.subr.bf16.mxu0 0
    %445 = vmatpush2.bf16.msra.mxu0 0
    %446 = vmatprep.subr.bf16.mxu0 0
    %447 = vmatpush2.bf16.msra.mxu0 0
    %448 = vmatprep.subr.bf16.mxu0 0
    %449 = vmatpush2.bf16.msra.mxu0 0
    %450 = vmatprep.subr.bf16.mxu0 0
    %451 = vmatpush2.bf16.msra.mxu0 0
    %452 = vmatprep.subr.bf16.mxu0 0
    %453 = vmatpush2.bf16.msra.mxu0 0
    %454 = vmatprep.mubr.bf16.mxu0 0
    %455 = vmatmul.mubr.bf16.gmra.mxu0 %v297
    %v456 = vpop.f32.mrf.mxu0
    %v457 = vadd.f32 0.0, %v456
    %v458 = vpop.f32.mrf.mxu0
    %v459 = vpop.f32.mrf.mxu0
    %v460 = vadd.f32 0.0, %v459
    %v461 = vpop.f32.mrf.mxu0
    %462 = vdwg.mxu0
    %463 = vmatprep.subr.bf16.mxu0 0
    %464 = vmatpush1.bf16.msra.mxu0 0
    %465 = vmatprep.subr.bf16.mxu0 0
    %466 = vmatpush1.bf16.msra.mxu0 0
    %467 = vmatprep.subr.bf16.mxu0 0
    %468 = vmatpush1.bf16.msra.mxu0 0
    %469 = vmatprep.subr.bf16.mxu0 0
    %470 = vmatpush1.bf16.msra.mxu0 0
    %471 = vmatprep.subr.bf16.mxu0 0
    %472 = vmatpush1.bf16.msra.mxu0 0
    %473 = vmatprep.subr.bf16.mxu0 0
    %474 = vmatpush1.bf16.msra.mxu0 0
    %475 = vmatprep.subr.bf16.mxu0 0
    %476 = vmatpush1.bf16.msra.mxu0 0
    %477 = vmatprep.subr.bf16.mxu0 0
    %478 = vmatpush1.bf16.msra.mxu0 %v286
    %479 = vmatprep.subr.bf16.mxu0 0
    %480 = vmatpush2.bf16.msra.mxu0 0
    %481 = vmatprep.subr.bf16.mxu0 0
    %482 = vmatpush2.bf16.msra.mxu0 0
    %483 = vmatprep.subr.bf16.mxu0 0
    %484 = vmatpush2.bf16.msra.mxu0 0
    %485 = vmatprep.subr.bf16.mxu0 0
    %486 = vmatpush2.bf16.msra.mxu0 0
    %487 = vmatprep.subr.bf16.mxu0 0
    %488 = vmatpush2.bf16.msra.mxu0 0
    %489 = vmatprep.subr.bf16.mxu0 0
    %490 = vmatpush2.bf16.msra.mxu0 0
    %491 = vmatprep.subr.bf16.mxu0 0
    %492 = vmatpush2.bf16.msra.mxu0 0
    %493 = vmatprep.subr.bf16.mxu0 0
    %494 = vmatpush2.bf16.msra.mxu0 0
    %495 = vmatprep.mubr.bf16.mxu0 0
    %496 = vmatmul.mubr.bf16.gmra.mxu0 %v297
    %v497 = vpop.f32.mrf.mxu0
    %v498 = vadd.f32 0.0, %v497
    %v499 = vpop.f32.mrf.mxu0
    %v500 = vpop.f32.mrf.mxu0
    %v501 = vadd.f32 0.0, %v500
    %v502 = vpop.f32.mrf.mxu0
    %503 = vdwg.mxu0
    %504 = vmatprep.subr.bf16.mxu0 0
    %505 = vmatpush1.bf16.msra.mxu0 0
    %506 = vmatprep.subr.bf16.mxu0 0
    %507 = vmatpush1.bf16.msra.mxu0 0
    %508 = vmatprep.subr.bf16.mxu0 0
    %509 = vmatpush1.bf16.msra.mxu0 0
    %510 = vmatprep.subr.bf16.mxu0 0
    %511 = vmatpush1.bf16.msra.mxu0 0
    %512 = vmatprep.subr.bf16.mxu0 0
    %513 = vmatpush1.bf16.msra.mxu0 0
    %514 = vmatprep.subr.bf16.mxu0 0
    %515 = vmatpush1.bf16.msra.mxu0 0
    %516 = vmatprep.subr.bf16.mxu0 0
    %517 = vmatpush1.bf16.msra.mxu0 0
    %518 = vmatprep.subr.bf16.mxu0 0
    %519 = vmatpush1.bf16.msra.mxu0 %v287
    %520 = vmatprep.subr.bf16.mxu0 0
    %521 = vmatpush2.bf16.msra.mxu0 0
    %522 = vmatprep.subr.bf16.mxu0 0
    %523 = vmatpush2.bf16.msra.mxu0 0
    %524 = vmatprep.subr.bf16.mxu0 0
    %525 = vmatpush2.bf16.msra.mxu0 0
    %526 = vmatprep.subr.bf16.mxu0 0
    %527 = vmatpush2.bf16.msra.mxu0 0
    %528 = vmatprep.subr.bf16.mxu0 0
    %529 = vmatpush2.bf16.msra.mxu0 0
    %530 = vmatprep.subr.bf16.mxu0 0
    %531 = vmatpush2.bf16.msra.mxu0 0
    %532 = vmatprep.subr.bf16.mxu0 0
    %533 = vmatpush2.bf16.msra.mxu0 0
    %534 = vmatprep.subr.bf16.mxu0 0
    %535 = vmatpush2.bf16.msra.mxu0 0
    %536 = vmatprep.mubr.bf16.mxu0 0
    %537 = vmatmul.mubr.bf16.gmra.mxu0 %v297
    %v538 = vpop.f32.mrf.mxu0
    %v539 = vadd.f32 0.0, %v538
    %v540 = vpop.f32.mrf.mxu0
    %v541 = vpop.f32.mrf.mxu0
    %v542 = vadd.f32 0.0, %v541
    %v543 = vpop.f32.mrf.mxu0
    %544 = vdwg.mxu0
    %545 = vmatprep.subr.bf16.mxu0 0
    %546 = vmatpush1.bf16.msra.mxu0 0
    %547 = vmatprep.subr.bf16.mxu0 0
    %548 = vmatpush1.bf16.msra.mxu0 0
    %549 = vmatprep.subr.bf16.mxu0 0
    %550 = vmatpush1.bf16.msra.mxu0 0
    %551 = vmatprep.subr.bf16.mxu0 0
    %552 = vmatpush1.bf16.msra.mxu0 0
    %553 = vmatprep.subr.bf16.mxu0 0
    %554 = vmatpush1.bf16.msra.mxu0 0
    %555 = vmatprep.subr.bf16.mxu0 0
    %556 = vmatpush1.bf16.msra.mxu0 0
    %557 = vmatprep.subr.bf16.mxu0 0
    %558 = vmatpush1.bf16.msra.mxu0 0
    %559 = vmatprep.subr.bf16.mxu0 0
    %560 = vmatpush1.bf16.msra.mxu0 %v288
    %561 = vmatprep.subr.bf16.mxu0 0
    %562 = vmatpush2.bf16.msra.mxu0 0
    %563 = vmatprep.subr.bf16.mxu0 0
    %564 = vmatpush2.bf16.msra.mxu0 0
    %565 = vmatprep.subr.bf16.mxu0 0
    %566 = vmatpush2.bf16.msra.mxu0 0
    %567 = vmatprep.subr.bf16.mxu0 0
    %568 = vmatpush2.bf16.msra.mxu0 0
    %569 = vmatprep.subr.bf16.mxu0 0
    %570 = vmatpush2.bf16.msra.mxu0 0
    %571 = vmatprep.subr.bf16.mxu0 0
    %572 = vmatpush2.bf16.msra.mxu0 0
    %573 = vmatprep.subr.bf16.mxu0 0
    %574 = vmatpush2.bf16.msra.mxu0 0
    %575 = vmatprep.subr.bf16.mxu0 0
    %576 = vmatpush2.bf16.msra.mxu0 0
    %577 = vmatprep.mubr.bf16.mxu0 0
    %578 = vmatmul.mubr.bf16.gmra.mxu0 %v297
    %v579 = vpop.f32.mrf.mxu0
    %v580 = vadd.f32 0.0, %v579
    %v581 = vpop.f32.mrf.mxu0
    %v582 = vpop.f32.mrf.mxu0
    %v583 = vadd.f32 0.0, %v582
    %v584 = vpop.f32.mrf.mxu0
    %585 = vdwg.mxu0
    %586 = vmatprep.subr.bf16.mxu0 0
    %587 = vmatpush1.bf16.msra.mxu0 0
    %588 = vmatprep.subr.bf16.mxu0 0
    %589 = vmatpush1.bf16.msra.mxu0 0
    %590 = vmatprep.subr.bf16.mxu0 0
    %591 = vmatpush1.bf16.msra.mxu0 0
    %592 = vmatprep.subr.bf16.mxu0 0
    %593 = vmatpush1.bf16.msra.mxu0 0
    %594 = vmatprep.subr.bf16.mxu0 0
    %595 = vmatpush1.bf16.msra.mxu0 0
    %596 = vmatprep.subr.bf16.mxu0 0
    %597 = vmatpush1.bf16.msra.mxu0 0
    %598 = vmatprep.subr.bf16.mxu0 0
    %599 = vmatpush1.bf16.msra.mxu0 0
    %600 = vmatprep.subr.bf16.mxu0 0
    %601 = vmatpush1.bf16.msra.mxu0 %v289
    %602 = vmatprep.subr.bf16.mxu0 0
    %603 = vmatpush2.bf16.msra.mxu0 0
    %604 = vmatprep.subr.bf16.mxu0 0
    %605 = vmatpush2.bf16.msra.mxu0 0
    %606 = vmatprep.subr.bf16.mxu0 0
    %607 = vmatpush2.bf16.msra.mxu0 0
    %608 = vmatprep.subr.bf16.mxu0 0
    %609 = vmatpush2.bf16.msra.mxu0 0
    %610 = vmatprep.subr.bf16.mxu0 0
    %611 = vmatpush2.bf16.msra.mxu0 0
    %612 = vmatprep.subr.bf16.mxu0 0
    %613 = vmatpush2.bf16.msra.mxu0 0
    %614 = vmatprep.subr.bf16.mxu0 0
    %615 = vmatpush2.bf16.msra.mxu0 0
    %616 = vmatprep.subr.bf16.mxu0 0
    %617 = vmatpush2.bf16.msra.mxu0 0
    %618 = vmatprep.mubr.bf16.mxu0 0
    %619 = vmatmul.mubr.bf16.gmra.mxu0 %v297
    %v620 = vpop.f32.mrf.mxu0
    %v621 = vadd.f32 0.0, %v620
    %v622 = vpop.f32.mrf.mxu0
    %v623 = vpop.f32.mrf.mxu0
    %v624 = vadd.f32 0.0, %v623
    %v625 = vpop.f32.mrf.mxu0
    %626 = vdwg.mxu0
    %v628 = vlaneseq
    %v629 = vshrl.u32 %v628, 7
    %v630 = vsub.s32 0, %v629
    %v631 = vrot.slane %v126, %v630
    %v633 = vadd.f32 %v334, %v631
    %v634 = vadd.f32 %v337, %v631
    %v635 = vadd.f32 %v375, %v631
    %v636 = vadd.f32 %v378, %v631
    %v637 = vadd.f32 %v416, %v631
    %v638 = vadd.f32 %v419, %v631
    %v639 = vadd.f32 %v457, %v631
    %v640 = vadd.f32 %v460, %v631
    %v641 = vadd.f32 %v498, %v631
    %v642 = vadd.f32 %v501, %v631
    %v643 = vadd.f32 %v539, %v631
    %v644 = vadd.f32 %v542, %v631
    %v645 = vadd.f32 %v580, %v631
    %v646 = vadd.f32 %v583, %v631
    %v647 = vadd.f32 %v621, %v631
    %v648 = vadd.f32 %v624, %v631
    %v649 = vadd.f32 %v633, %v634
    %v650 = vadd.f32 %v649, %v635
    %v651 = vadd.f32 %v650, %v636
    %v652 = vadd.f32 %v651, %v637
    %v653 = vadd.f32 %v652, %v638
    %v654 = vadd.f32 %v653, %v639
    %v655 = vadd.f32 %v654, %v640
    %v656 = vadd.f32 %v655, %v641
    %v657 = vadd.f32 %v656, %v642
    %v658 = vadd.f32 %v657, %v643
    %v659 = vadd.f32 %v658, %v644
    %v660 = vadd.f32 %v659, %v645
    %v661 = vadd.f32 %v660, %v646
    %v662 = vadd.f32 %v661, %v647
    %v663 = vadd.f32 %v662, %v648
    %v664 = vrot.slane %v663, 4
    %v665 = vadd.f32 %v663, %v664
    %v666 = vrot.slane %v665, 2
    %v667 = vadd.f32 %v665, %v666
    %v668 = vrot.slane %v667, 1
    %v669 = vadd.f32 %v667, %v668
    %v670 = vrcp.pop 128.0
    %v671 = vmul.f32 %v669, %v670
    %v672 = vsub.f32 %v633, %v671
    %v673 = vsub.f32 %v634, %v671
    %v674 = vsub.f32 %v635, %v671
    %v675 = vsub.f32 %v636, %v671
    %v676 = vsub.f32 %v637, %v671
    %v677 = vsub.f32 %v638, %v671
    %v678 = vsub.f32 %v639, %v671
    %v679 = vsub.f32 %v640, %v671
    %v680 = vsub.f32 %v641, %v671
    %v681 = vsub.f32 %v642, %v671
    %v682 = vsub.f32 %v643, %v671
    %v683 = vsub.f32 %v644, %v671
    %v684 = vsub.f32 %v645, %v671
    %v685 = vsub.f32 %v646, %v671
    %v686 = vsub.f32 %v647, %v671
    %v687 = vsub.f32 %v648, %v671
    %v688 = vmul.f32 %v672, %v672
    %v689 = vmul.f32 %v673, %v673
    %v690 = vmul.f32 %v674, %v674
    %v691 = vmul.f32 %v675, %v675
    %v692 = vmul.f32 %v676, %v676
    %v693 = vmul.f32 %v677, %v677
    %v694 = vmul.f32 %v678, %v678
    %v695 = vmul.f32 %v679, %v679
    %v696 = vmul.f32 %v680, %v680
    %v697 = vmul.f32 %v681, %v681
    %v698 = vmul.f32 %v682, %v682
    %v699 = vmul.f32 %v683, %v683
    %v700 = vmul.f32 %v684, %v684
    %v701 = vmul.f32 %v685, %v685
    %v702 = vmul.f32 %v686, %v686
    %v703 = vmul.f32 %v687, %v687
    %v704 = vadd.f32 %v688, %v689
    %v705 = vadd.f32 %v704, %v690
    %v706 = vadd.f32 %v705, %v691
    %v707 = vadd.f32 %v706, %v692
    %v708 = vadd.f32 %v707, %v693
    %v709 = vadd.f32 %v708, %v694
    %v710 = vadd.f32 %v709, %v695
    %v711 = vadd.f32 %v710, %v696
    %v712 = vadd.f32 %v711, %v697
    %v713 = vadd.f32 %v712, %v698
    %v714 = vadd.f32 %v713, %v699
    %v715 = vadd.f32 %v714, %v700
    %v716 = vadd.f32 %v715, %v701
    %v717 = vadd.f32 %v716, %v702
    %v718 = vadd.f32 %v717, %v703
    %v719 = vrot.slane %v718, 4
    %v720 = vadd.f32 %v718, %v719
    %v721 = vrot.slane %v720, 2
    %v722 = vadd.f32 %v720, %v721
    %v723 = vrot.slane %v722, 1
    %v724 = vadd.f32 %v722, %v723
    %v725 = vmul.f32 %v724, %v670
    %v726 = vadd.f32 %v725, 1e-05
    %v727 = vrsqrt.pop %v726
    %v728 = vmul.f32 %v672, %v727
    %v729 = vmul.f32 %v673, %v727
    %v730 = vmul.f32 %v674, %v727
    %v731 = vmul.f32 %v675, %v727
    %v732 = vmul.f32 %v676, %v727
    %v733 = vmul.f32 %v677, %v727
    %v734 = vmul.f32 %v678, %v727
    %v735 = vmul.f32 %v679, %v727
    %v736 = vmul.f32 %v680, %v727
    %v737 = vmul.f32 %v681, %v727
    %v738 = vmul.f32 %v682, %v727
    %v739 = vmul.f32 %v683, %v727
    %v740 = vmul.f32 %v684, %v727
    %v741 = vmul.f32 %v685, %v727
    %v742 = vmul.f32 %v686, %v727
    %v743 = vmul.f32 %v687, %v727
    %v745 = vlaneseq
    %v746 = vshrl.u32 %v745, 7
    %v747 = vsub.s32 0, %v746
    %v748 = vrot.slane %v127, %v747
    %v750 = vmul.f32 %v728, %v748
    %v751 = vmul.f32 %v729, %v748
    %v752 = vmul.f32 %v730, %v748
    %v753 = vmul.f32 %v731, %v748
    %v754 = vmul.f32 %v732, %v748
    %v755 = vmul.f32 %v733, %v748
    %v756 = vmul.f32 %v734, %v748
    %v757 = vmul.f32 %v735, %v748
    %v758 = vmul.f32 %v736, %v748
    %v759 = vmul.f32 %v737, %v748
    %v760 = vmul.f32 %v738, %v748
    %v761 = vmul.f32 %v739, %v748
    %v762 = vmul.f32 %v740, %v748
    %v763 = vmul.f32 %v741, %v748
    %v764 = vmul.f32 %v742, %v748
    %v765 = vmul.f32 %v743, %v748
    %v767 = vlaneseq
    %v768 = vshrl.u32 %v767, 7
    %v769 = vsub.s32 0, %v768
    %v770 = vrot.slane %v128, %v769
    %v772 = vadd.f32 %v750, %v770
    %v773 = vadd.f32 %v751, %v770
    %v774 = vadd.f32 %v752, %v770
    %v775 = vadd.f32 %v753, %v770
    %v776 = vadd.f32 %v754, %v770
    %v777 = vadd.f32 %v755, %v770
    %v778 = vadd.f32 %v756, %v770
    %v779 = vadd.f32 %v757, %v770
    %v780 = vadd.f32 %v758, %v770
    %v781 = vadd.f32 %v759, %v770
    %v782 = vadd.f32 %v760, %v770
    %v783 = vadd.f32 %v761, %v770
    %v784 = vadd.f32 %v762, %v770
    %v785 = vadd.f32 %v763, %v770
    %v786 = vadd.f32 %v764, %v770
    %v787 = vadd.f32 %v765, %v770
    %v788 = vmax.f32 %v772, 0.0
    %v789 = vmax.f32 %v773, 0.0
    %v790 = vmax.f32 %v774, 0.0
    %v791 = vmax.f32 %v775, 0.0
    %v792 = vmax.f32 %v776, 0.0
    %v793 = vmax.f32 %v777, 0.0
    %v794 = vmax.f32 %v778, 0.0
    %v795 = vmax.f32 %v779, 0.0
    %v796 = vmax.f32 %v780, 0.0
    %v797 = vmax.f32 %v781, 0.0
    %v798 = vmax.f32 %v782, 0.0
    %v799 = vmax.f32 %v783, 0.0
    %v800 = vmax.f32 %v784, 0.0
    %v801 = vmax.f32 %v785, 0.0
    %v802 = vmax.f32 %v786, 0.0
    %v803 = vmax.f32 %v787, 0.0
    %v804 = vld [vmem:[#allocation8] sm:$0xf]
    %v805 = vld [vmem:[#allocation8 + $0x4] sm:$0xf]
    %v806 = vld [vmem:[#allocation8 + $0x8] sm:$0xf]
    %v807 = vld [vmem:[#allocation8 + $0xc] sm:$0xf]
    %v808 = vld [vmem:[#allocation8 + $0x10] sm:$0xf]
    %v809 = vld [vmem:[#allocation8 + $0x14] sm:$0xf]
    %v810 = vld [vmem:[#allocation8 + $0x18] sm:$0xf]
    %v811 = vld [vmem:[#allocation8 + $0x1c] sm:$0xf]
    %v812 = vld [vmem:[#allocation8 + $0x20] sm:$0xf]
    %v813 = vld [vmem:[#allocation8 + $0x24] sm:$0xf]
    %v814 = vld [vmem:[#allocation8 + $0x28] sm:$0xf]
    %v815 = vld [vmem:[#allocation8 + $0x2c] sm:$0xf]
    %v816 = vld [vmem:[#allocation8 + $0x30] sm:$0xf]
    %v817 = vld [vmem:[#allocation8 + $0x34] sm:$0xf]
    %v818 = vld [vmem:[#allocation8 + $0x38] sm:$0xf]
    %v819 = vld [vmem:[#allocation8 + $0x3c] sm:$0xf]
    %v820 = vld [vmem:[%s7] sm:$0x1]
    %v821 = vld [vmem:[%s8] sm:$0x1]
    %v822 = vld [vmem:[%s9] sm:$0x1]
    %v823 = vpack.c.bf16 %v789, %v788
    %v824 = vpack.c.bf16 %v791, %v790
    %v825 = vpack.c.bf16 %v793, %v792
    %v826 = vpack.c.bf16 %v795, %v794
    %v827 = vpack.c.bf16 %v797, %v796
    %v828 = vpack.c.bf16 %v799, %v798
    %v829 = vpack.c.bf16 %v801, %v800
    %v830 = vpack.c.bf16 %v803, %v802
    %v847 = vunpack.c.l.b16 %v804
    %v848 = vunpack.c.l.b16 %v805
    %v849 = vunpack.c.l.b16 %v806
    %v850 = vunpack.c.l.b16 %v807
    %v851 = vunpack.c.l.b16 %v808
    %v852 = vunpack.c.l.b16 %v809
    %v853 = vunpack.c.l.b16 %v810
    %v854 = vunpack.c.l.b16 %v811
    %v855 = vunpack.c.l.b16 %v812
    %v856 = vunpack.c.l.b16 %v813
    %v857 = vunpack.c.l.b16 %v814
    %v858 = vunpack.c.l.b16 %v815
    %v859 = vunpack.c.l.b16 %v816
    %v860 = vunpack.c.l.b16 %v817
    %v861 = vunpack.c.l.b16 %v818
    %v862 = vunpack.c.l.b16 %v819
    %v863 = vpack.c.b16 %v848, %v847
    %v864 = vpack.c.b16 %v850, %v849
    %v865 = vpack.c.b16 %v852, %v851
    %v866 = vpack.c.b16 %v854, %v853
    %v867 = vpack.c.b16 %v856, %v855
    %v868 = vpack.c.b16 %v858, %v857
    %v869 = vpack.c.b16 %v860, %v859
    %v870 = vpack.c.b16 %v862, %v861
    %879 = vmatprep.subr.bf16.mxu0 0
    %880 = vmatpush1.bf16.msra.mxu0 %v870
    %881 = vmatprep.subr.bf16.mxu0 0
    %882 = vmatpush1.bf16.msra.mxu0 %v869
    %883 = vmatprep.subr.bf16.mxu0 0
    %884 = vmatpush1.bf16.msra.mxu0 %v868
    %885 = vmatprep.subr.bf16.mxu0 0
    %886 = vmatpush1.bf16.msra.mxu0 %v867
    %887 = vmatprep.subr.bf16.mxu0 0
    %888 = vmatpush1.bf16.msra.mxu0 %v866
    %889 = vmatprep.subr.bf16.mxu0 0
    %890 = vmatpush1.bf16.msra.mxu0 %v865
    %891 = vmatprep.subr.bf16.mxu0 0
    %892 = vmatpush1.bf16.msra.mxu0 %v864
    %893 = vmatprep.subr.bf16.mxu0 0
    %894 = vmatpush1.bf16.msra.mxu0 %v863
    %895 = vmatprep.subr.bf16.mxu0 0
    %896 = vmatpush2.bf16.msra.mxu0 0
    %897 = vmatprep.subr.bf16.mxu0 0
    %898 = vmatpush2.bf16.msra.mxu0 0
    %899 = vmatprep.subr.bf16.mxu0 0
    %900 = vmatpush2.bf16.msra.mxu0 0
    %901 = vmatprep.subr.bf16.mxu0 0
    %902 = vmatpush2.bf16.msra.mxu0 0
    %903 = vmatprep.subr.bf16.mxu0 0
    %904 = vmatpush2.bf16.msra.mxu0 0
    %905 = vmatprep.subr.bf16.mxu0 0
    %906 = vmatpush2.bf16.msra.mxu0 0
    %907 = vmatprep.subr.bf16.mxu0 0
    %908 = vmatpush2.bf16.msra.mxu0 0
    %909 = vmatprep.subr.bf16.mxu0 0
    %910 = vmatpush2.bf16.msra.mxu0 0
    %911 = vmatprep.mubr.bf16.mxu0 0
    %912 = vmatmul.mubr.bf16.gmra.mxu0 %v823
    %v913 = vpop.f32.mrf.mxu0
    %v914 = vadd.f32 0.0, %v913
    %v915 = vpop.f32.mrf.mxu0
    %v916 = vpop.f32.mrf.mxu0
    %v917 = vadd.f32 0.0, %v916
    %v918 = vpop.f32.mrf.mxu0
    %919 = vmatprep.mubr.bf16.mxu0 0
    %920 = vmatmul.mubr.bf16.gmra.mxu0 %v824
    %v921 = vpop.f32.mrf.mxu0
    %v922 = vadd.f32 0.0, %v921
    %v923 = vpop.f32.mrf.mxu0
    %v924 = vpop.f32.mrf.mxu0
    %v925 = vadd.f32 0.0, %v924
    %v926 = vpop.f32.mrf.mxu0
    %927 = vmatprep.mubr.bf16.mxu0 0
    %928 = vmatmul.mubr.bf16.gmra.mxu0 %v825
    %v929 = vpop.f32.mrf.mxu0
    %v930 = vadd.f32 0.0, %v929
    %v931 = vpop.f32.mrf.mxu0
    %v932 = vpop.f32.mrf.mxu0
    %v933 = vadd.f32 0.0, %v932
    %v934 = vpop.f32.mrf.mxu0
    %935 = vmatprep.mubr.bf16.mxu0 0
    %936 = vmatmul.mubr.bf16.gmra.mxu0 %v826
    %v937 = vpop.f32.mrf.mxu0
    %v938 = vadd.f32 0.0, %v937
    %v939 = vpop.f32.mrf.mxu0
    %v940 = vpop.f32.mrf.mxu0
    %v941 = vadd.f32 0.0, %v940
    %v942 = vpop.f32.mrf.mxu0
    %943 = vmatprep.mubr.bf16.mxu0 0
    %944 = vmatmul.mubr.bf16.gmra.mxu0 %v827
    %v945 = vpop.f32.mrf.mxu0
    %v946 = vadd.f32 0.0, %v945
    %v947 = vpop.f32.mrf.mxu0
    %v948 = vpop.f32.mrf.mxu0
    %v949 = vadd.f32 0.0, %v948
    %v950 = vpop.f32.mrf.mxu0
    %951 = vmatprep.mubr.bf16.mxu0 0
    %952 = vmatmul.mubr.bf16.gmra.mxu0 %v828
    %v953 = vpop.f32.mrf.mxu0
    %v954 = vadd.f32 0.0, %v953
    %v955 = vpop.f32.mrf.mxu0
    %v956 = vpop.f32.mrf.mxu0
    %v957 = vadd.f32 0.0, %v956
    %v958 = vpop.f32.mrf.mxu0
    %959 = vmatprep.mubr.bf16.mxu0 0
    %960 = vmatmul.mubr.bf16.gmra.mxu0 %v829
    %v961 = vpop.f32.mrf.mxu0
    %v962 = vadd.f32 0.0, %v961
    %v963 = vpop.f32.mrf.mxu0
    %v964 = vpop.f32.mrf.mxu0
    %v965 = vadd.f32 0.0, %v964
    %v966 = vpop.f32.mrf.mxu0
    %967 = vmatprep.mubr.bf16.mxu0 0
    %968 = vmatmul.mubr.bf16.gmra.mxu0 %v830
    %v969 = vpop.f32.mrf.mxu0
    %v970 = vadd.f32 0.0, %v969
    %v971 = vpop.f32.mrf.mxu0
    %v972 = vpop.f32.mrf.mxu0
    %v973 = vadd.f32 0.0, %v972
    %v974 = vpop.f32.mrf.mxu0
    %975 = vdwg.mxu0
    %v976 = vpack.c.bf16 %v917, %v914
    %v977 = vpack.c.bf16 %v925, %v922
    %v978 = vpack.c.bf16 %v933, %v930
    %v979 = vpack.c.bf16 %v941, %v938
    %v980 = vpack.c.bf16 %v949, %v946
    %v981 = vpack.c.bf16 %v957, %v954
    %v982 = vpack.c.bf16 %v965, %v962
    %v983 = vpack.c.bf16 %v973, %v970
    %984 = vmatprep.subr.bf16.mxu0 0
    %985 = vmatpush1.bf16.msra.mxu0 0
    %986 = vmatprep.subr.bf16.mxu0 0
    %987 = vmatpush1.bf16.msra.mxu0 0
    %988 = vmatprep.subr.bf16.mxu0 0
    %989 = vmatpush1.bf16.msra.mxu0 0
    %990 = vmatprep.subr.bf16.mxu0 0
    %991 = vmatpush1.bf16.msra.mxu0 0
    %992 = vmatprep.subr.bf16.mxu0 0
    %993 = vmatpush1.bf16.msra.mxu0 0
    %994 = vmatprep.subr.bf16.mxu0 0
    %995 = vmatpush1.bf16.msra.mxu0 0
    %996 = vmatprep.subr.bf16.mxu0 0
    %997 = vmatpush1.bf16.msra.mxu0 0
    %998 = vmatprep.subr.bf16.mxu0 0
    %999 = vmatpush1.bf16.msra.mxu0 %v976
    %1000 = vmatprep.subr.bf16.mxu0 0
    %1001 = vmatpush2.bf16.msra.mxu0 0
    %1002 = vmatprep.subr.bf16.mxu0 0
    %1003 = vmatpush2.bf16.msra.mxu0 0
    %1004 = vmatprep.subr.bf16.mxu0 0
    %1005 = vmatpush2.bf16.msra.mxu0 0
    %1006 = vmatprep.subr.bf16.mxu0 0
    %1007 = vmatpush2.bf16.msra.mxu0 0
    %1008 = vmatprep.subr.bf16.mxu0 0
    %1009 = vmatpush2.bf16.msra.mxu0 0
    %1010 = vmatprep.subr.bf16.mxu0 0
    %1011 = vmatpush2.bf16.msra.mxu0 0
    %1012 = vmatprep.subr.bf16.mxu0 0
    %1013 = vmatpush2.bf16.msra.mxu0 0
    %1014 = vmatprep.subr.bf16.mxu0 0
    %1015 = vmatpush2.bf16.msra.mxu0 0
    %1016 = vmatprep.mubr.bf16.mxu0 0
    %1017 = vmatmul.mubr.bf16.gmra.mxu0 %v297
    %v1018 = vpop.f32.mrf.mxu0
    %v1019 = vadd.f32 0.0, %v1018
    %v1020 = vpop.f32.mrf.mxu0
    %v1021 = vpop.f32.mrf.mxu0
    %v1022 = vadd.f32 0.0, %v1021
    %v1023 = vpop.f32.mrf.mxu0
    %1024 = vdwg.mxu0
    %1025 = vmatprep.subr.bf16.mxu0 0
    %1026 = vmatpush1.bf16.msra.mxu0 0
    %1027 = vmatprep.subr.bf16.mxu0 0
    %1028 = vmatpush1.bf16.msra.mxu0 0
    %1029 = vmatprep.subr.bf16.mxu0 0
    %1030 = vmatpush1.bf16.msra.mxu0 0
    %1031 = vmatprep.subr.bf16.mxu0 0
    %1032 = vmatpush1.bf16.msra.mxu0 0
    %1033 = vmatprep.subr.bf16.mxu0 0
    %1034 = vmatpush1.bf16.msra.mxu0 0
    %1035 = vmatprep.subr.bf16.mxu0 0
    %1036 = vmatpush1.bf16.msra.mxu0 0
    %1037 = vmatprep.subr.bf16.mxu0 0
    %1038 = vmatpush1.bf16.msra.mxu0 0
    %1039 = vmatprep.subr.bf16.mxu0 0
    %1040 = vmatpush1.bf16.msra.mxu0 %v977
    %1041 = vmatprep.subr.bf16.mxu0 0
    %1042 = vmatpush2.bf16.msra.mxu0 0
    %1043 = vmatprep.subr.bf16.mxu0 0
    %1044 = vmatpush2.bf16.msra.mxu0 0
    %1045 = vmatprep.subr.bf16.mxu0 0
    %1046 = vmatpush2.bf16.msra.mxu0 0
    %1047 = vmatprep.subr.bf16.mxu0 0
    %1048 = vmatpush2.bf16.msra.mxu0 0
    %1049 = vmatprep.subr.bf16.mxu0 0
    %1050 = vmatpush2.bf16.msra.mxu0 0
    %1051 = vmatprep.subr.bf16.mxu0 0
    %1052 = vmatpush2.bf16.msra.mxu0 0
    %1053 = vmatprep.subr.bf16.mxu0 0
    %1054 = vmatpush2.bf16.msra.mxu0 0
    %1055 = vmatprep.subr.bf16.mxu0 0
    %1056 = vmatpush2.bf16.msra.mxu0 0
    %1057 = vmatprep.mubr.bf16.mxu0 0
    %1058 = vmatmul.mubr.bf16.gmra.mxu0 %v297
    %v1059 = vpop.f32.mrf.mxu0
    %v1060 = vadd.f32 0.0, %v1059
    %v1061 = vpop.f32.mrf.mxu0
    %v1062 = vpop.f32.mrf.mxu0
    %v1063 = vadd.f32 0.0, %v1062
    %v1064 = vpop.f32.mrf.mxu0
    %1065 = vdwg.mxu0
    %1066 = vmatprep.subr.bf16.mxu0 0
    %1067 = vmatpush1.bf16.msra.mxu0 0
    %1068 = vmatprep.subr.bf16.mxu0 0
    %1069 = vmatpush1.bf16.msra.mxu0 0
    %1070 = vmatprep.subr.bf16.mxu0 0
    %1071 = vmatpush1.bf16.msra.mxu0 0
    %1072 = vmatprep.subr.bf16.mxu0 0
    %1073 = vmatpush1.bf16.msra.mxu0 0
    %1074 = vmatprep.subr.bf16.mxu0 0
    %1075 = vmatpush1.bf16.msra.mxu0 0
    %1076 = vmatprep.subr.bf16.mxu0 0
    %1077 = vmatpush1.bf16.msra.mxu0 0
    %1078 = vmatprep.subr.bf16.mxu0 0
    %1079 = vmatpush1.bf16.msra.mxu0 0
    %1080 = vmatprep.subr.bf16.mxu0 0
    %1081 = vmatpush1.bf16.msra.mxu0 %v978
    %1082 = vmatprep.subr.bf16.mxu0 0
    %1083 = vmatpush2.bf16.msra.mxu0 0
    %1084 = vmatprep.subr.bf16.mxu0 0
    %1085 = vmatpush2.bf16.msra.mxu0 0
    %1086 = vmatprep.subr.bf16.mxu0 0
    %1087 = vmatpush2.bf16.msra.mxu0 0
    %1088 = vmatprep.subr.bf16.mxu0 0
    %1089 = vmatpush2.bf16.msra.mxu0 0
    %1090 = vmatprep.subr.bf16.mxu0 0
    %1091 = vmatpush2.bf16.msra.mxu0 0
    %1092 = vmatprep.subr.bf16.mxu0 0
    %1093 = vmatpush2.bf16.msra.mxu0 0
    %1094 = vmatprep.subr.bf16.mxu0 0
    %1095 = vmatpush2.bf16.msra.mxu0 0
    %1096 = vmatprep.subr.bf16.mxu0 0
    %1097 = vmatpush2.bf16.msra.mxu0 0
    %1098 = vmatprep.mubr.bf16.mxu0 0
    %1099 = vmatmul.mubr.bf16.gmra.mxu0 %v297
    %v1100 = vpop.f32.mrf.mxu0
    %v1101 = vadd.f32 0.0, %v1100
    %v1102 = vpop.f32.mrf.mxu0
    %v1103 = vpop.f32.mrf.mxu0
    %v1104 = vadd.f32 0.0, %v1103
    %v1105 = vpop.f32.mrf.mxu0
    %1106 = vdwg.mxu0
    %1107 = vmatprep.subr.bf16.mxu0 0
    %1108 = vmatpush1.bf16.msra.mxu0 0
    %1109 = vmatprep.subr.bf16.mxu0 0
    %1110 = vmatpush1.bf16.msra.mxu0 0
    %1111 = vmatprep.subr.bf16.mxu0 0
    %1112 = vmatpush1.bf16.msra.mxu0 0
    %1113 = vmatprep.subr.bf16.mxu0 0
    %1114 = vmatpush1.bf16.msra.mxu0 0
    %1115 = vmatprep.subr.bf16.mxu0 0
    %1116 = vmatpush1.bf16.msra.mxu0 0
    %1117 = vmatprep.subr.bf16.mxu0 0
    %1118 = vmatpush1.bf16.msra.mxu0 0
    %1119 = vmatprep.subr.bf16.mxu0 0
    %1120 = vmatpush1.bf16.msra.mxu0 0
    %1121 = vmatprep.subr.bf16.mxu0 0
    %1122 = vmatpush1.bf16.msra.mxu0 %v979
    %1123 = vmatprep.subr.bf16.mxu0 0
    %1124 = vmatpush2.bf16.msra.mxu0 0
    %1125 = vmatprep.subr.bf16.mxu0 0
    %1126 = vmatpush2.bf16.msra.mxu0 0
    %1127 = vmatprep.subr.bf16.mxu0 0
    %1128 = vmatpush2.bf16.msra.mxu0 0
    %1129 = vmatprep.subr.bf16.mxu0 0
    %1130 = vmatpush2.bf16.msra.mxu0 0
    %1131 = vmatprep.subr.bf16.mxu0 0
    %1132 = vmatpush2.bf16.msra.mxu0 0
    %1133 = vmatprep.subr.bf16.mxu0 0
    %1134 = vmatpush2.bf16.msra.mxu0 0
    %1135 = vmatprep.subr.bf16.mxu0 0
    %1136 = vmatpush2.bf16.msra.mxu0 0
    %1137 = vmatprep.subr.bf16.mxu0 0
    %1138 = vmatpush2.bf16.msra.mxu0 0
    %1139 = vmatprep.mubr.bf16.mxu0 0
    %1140 = vmatmul.mubr.bf16.gmra.mxu0 %v297
    %v1141 = vpop.f32.mrf.mxu0
    %v1142 = vadd.f32 0.0, %v1141
    %v1143 = vpop.f32.mrf.mxu0
    %v1144 = vpop.f32.mrf.mxu0
    %v1145 = vadd.f32 0.0, %v1144
    %v1146 = vpop.f32.mrf.mxu0
    %1147 = vdwg.mxu0
    %1148 = vmatprep.subr.bf16.mxu0 0
    %1149 = vmatpush1.bf16.msra.mxu0 0
    %1150 = vmatprep.subr.bf16.mxu0 0
    %1151 = vmatpush1.bf16.msra.mxu0 0
    %1152 = vmatprep.subr.bf16.mxu0 0
    %1153 = vmatpush1.bf16.msra.mxu0 0
    %1154 = vmatprep.subr.bf16.mxu0 0
    %1155 = vmatpush1.bf16.msra.mxu0 0
    %1156 = vmatprep.subr.bf16.mxu0 0
    %1157 = vmatpush1.bf16.msra.mxu0 0
    %1158 = vmatprep.subr.bf16.mxu0 0
    %1159 = vmatpush1.bf16.msra.mxu0 0
    %1160 = vmatprep.subr.bf16.mxu0 0
    %1161 = vmatpush1.bf16.msra.mxu0 0
    %1162 = vmatprep.subr.bf16.mxu0 0
    %1163 = vmatpush1.bf16.msra.mxu0 %v980
    %1164 = vmatprep.subr.bf16.mxu0 0
    %1165 = vmatpush2.bf16.msra.mxu0 0
    %1166 = vmatprep.subr.bf16.mxu0 0
    %1167 = vmatpush2.bf16.msra.mxu0 0
    %1168 = vmatprep.subr.bf16.mxu0 0
    %1169 = vmatpush2.bf16.msra.mxu0 0
    %1170 = vmatprep.subr.bf16.mxu0 0
    %1171 = vmatpush2.bf16.msra.mxu0 0
    %1172 = vmatprep.subr.bf16.mxu0 0
    %1173 = vmatpush2.bf16.msra.mxu0 0
    %1174 = vmatprep.subr.bf16.mxu0 0
    %1175 = vmatpush2.bf16.msra.mxu0 0
    %1176 = vmatprep.subr.bf16.mxu0 0
    %1177 = vmatpush2.bf16.msra.mxu0 0
    %1178 = vmatprep.subr.bf16.mxu0 0
    %1179 = vmatpush2.bf16.msra.mxu0 0
    %1180 = vmatprep.mubr.bf16.mxu0 0
    %1181 = vmatmul.mubr.bf16.gmra.mxu0 %v297
    %v1182 = vpop.f32.mrf.mxu0
    %v1183 = vadd.f32 0.0, %v1182
    %v1184 = vpop.f32.mrf.mxu0
    %v1185 = vpop.f32.mrf.mxu0
    %v1186 = vadd.f32 0.0, %v1185
    %v1187 = vpop.f32.mrf.mxu0
    %1188 = vdwg.mxu0
    %1189 = vmatprep.subr.bf16.mxu0 0
    %1190 = vmatpush1.bf16.msra.mxu0 0
    %1191 = vmatprep.subr.bf16.mxu0 0
    %1192 = vmatpush1.bf16.msra.mxu0 0
    %1193 = vmatprep.subr.bf16.mxu0 0
    %1194 = vmatpush1.bf16.msra.mxu0 0
    %1195 = vmatprep.subr.bf16.mxu0 0
    %1196 = vmatpush1.bf16.msra.mxu0 0
    %1197 = vmatprep.subr.bf16.mxu0 0
    %1198 = vmatpush1.bf16.msra.mxu0 0
    %1199 = vmatprep.subr.bf16.mxu0 0
    %1200 = vmatpush1.bf16.msra.mxu0 0
    %1201 = vmatprep.subr.bf16.mxu0 0
    %1202 = vmatpush1.bf16.msra.mxu0 0
    %1203 = vmatprep.subr.bf16.mxu0 0
    %1204 = vmatpush1.bf16.msra.mxu0 %v981
    %1205 = vmatprep.subr.bf16.mxu0 0
    %1206 = vmatpush2.bf16.msra.mxu0 0
    %1207 = vmatprep.subr.bf16.mxu0 0
    %1208 = vmatpush2.bf16.msra.mxu0 0
    %1209 = vmatprep.subr.bf16.mxu0 0
    %1210 = vmatpush2.bf16.msra.mxu0 0
    %1211 = vmatprep.subr.bf16.mxu0 0
    %1212 = vmatpush2.bf16.msra.mxu0 0
    %1213 = vmatprep.subr.bf16.mxu0 0
    %1214 = vmatpush2.bf16.msra.mxu0 0
    %1215 = vmatprep.subr.bf16.mxu0 0
    %1216 = vmatpush2.bf16.msra.mxu0 0
    %1217 = vmatprep.subr.bf16.mxu0 0
    %1218 = vmatpush2.bf16.msra.mxu0 0
    %1219 = vmatprep.subr.bf16.mxu0 0
    %1220 = vmatpush2.bf16.msra.mxu0 0
    %1221 = vmatprep.mubr.bf16.mxu0 0
    %1222 = vmatmul.mubr.bf16.gmra.mxu0 %v297
    %v1223 = vpop.f32.mrf.mxu0
    %v1224 = vadd.f32 0.0, %v1223
    %v1225 = vpop.f32.mrf.mxu0
    %v1226 = vpop.f32.mrf.mxu0
    %v1227 = vadd.f32 0.0, %v1226
    %v1228 = vpop.f32.mrf.mxu0
    %1229 = vdwg.mxu0
    %1230 = vmatprep.subr.bf16.mxu0 0
    %1231 = vmatpush1.bf16.msra.mxu0 0
    %1232 = vmatprep.subr.bf16.mxu0 0
    %1233 = vmatpush1.bf16.msra.mxu0 0
    %1234 = vmatprep.subr.bf16.mxu0 0
    %1235 = vmatpush1.bf16.msra.mxu0 0
    %1236 = vmatprep.subr.bf16.mxu0 0
    %1237 = vmatpush1.bf16.msra.mxu0 0
    %1238 = vmatprep.subr.bf16.mxu0 0
    %1239 = vmatpush1.bf16.msra.mxu0 0
    %1240 = vmatprep.subr.bf16.mxu0 0
    %1241 = vmatpush1.bf16.msra.mxu0 0
    %1242 = vmatprep.subr.bf16.mxu0 0
    %1243 = vmatpush1.bf16.msra.mxu0 0
    %1244 = vmatprep.subr.bf16.mxu0 0
    %1245 = vmatpush1.bf16.msra.mxu0 %v982
    %1246 = vmatprep.subr.bf16.mxu0 0
    %1247 = vmatpush2.bf16.msra.mxu0 0
    %1248 = vmatprep.subr.bf16.mxu0 0
    %1249 = vmatpush2.bf16.msra.mxu0 0
    %1250 = vmatprep.subr.bf16.mxu0 0
    %1251 = vmatpush2.bf16.msra.mxu0 0
    %1252 = vmatprep.subr.bf16.mxu0 0
    %1253 = vmatpush2.bf16.msra.mxu0 0
    %1254 = vmatprep.subr.bf16.mxu0 0
    %1255 = vmatpush2.bf16.msra.mxu0 0
    %1256 = vmatprep.subr.bf16.mxu0 0
    %1257 = vmatpush2.bf16.msra.mxu0 0
    %1258 = vmatprep.subr.bf16.mxu0 0
    %1259 = vmatpush2.bf16.msra.mxu0 0
    %1260 = vmatprep.subr.bf16.mxu0 0
    %1261 = vmatpush2.bf16.msra.mxu0 0
    %1262 = vmatprep.mubr.bf16.mxu0 0
    %1263 = vmatmul.mubr.bf16.gmra.mxu0 %v297
    %v1264 = vpop.f32.mrf.mxu0
    %v1265 = vadd.f32 0.0, %v1264
    %v1266 = vpop.f32.mrf.mxu0
    %v1267 = vpop.f32.mrf.mxu0
    %v1268 = vadd.f32 0.0, %v1267
    %v1269 = vpop.f32.mrf.mxu0
    %1270 = vdwg.mxu0
    %1271 = vmatprep.subr.bf16.mxu0 0
    %1272 = vmatpush1.bf16.msra.mxu0 0
    %1273 = vmatprep.subr.bf16.mxu0 0
    %1274 = vmatpush1.bf16.msra.mxu0 0
    %1275 = vmatprep.subr.bf16.mxu0 0
    %1276 = vmatpush1.bf16.msra.mxu0 0
    %1277 = vmatprep.subr.bf16.mxu0 0
    %1278 = vmatpush1.bf16.msra.mxu0 0
    %1279 = vmatprep.subr.bf16.mxu0 0
    %1280 = vmatpush1.bf16.msra.mxu0 0
    %1281 = vmatprep.subr.bf16.mxu0 0
    %1282 = vmatpush1.bf16.msra.mxu0 0
    %1283 = vmatprep.subr.bf16.mxu0 0
    %1284 = vmatpush1.bf16.msra.mxu0 0
    %1285 = vmatprep.subr.bf16.mxu0 0
    %1286 = vmatpush1.bf16.msra.mxu0 %v983
    %1287 = vmatprep.subr.bf16.mxu0 0
    %1288 = vmatpush2.bf16.msra.mxu0 0
    %1289 = vmatprep.subr.bf16.mxu0 0
    %1290 = vmatpush2.bf16.msra.mxu0 0
    %1291 = vmatprep.subr.bf16.mxu0 0
    %1292 = vmatpush2.bf16.msra.mxu0 0
    %1293 = vmatprep.subr.bf16.mxu0 0
    %1294 = vmatpush2.bf16.msra.mxu0 0
    %1295 = vmatprep.subr.bf16.mxu0 0
    %1296 = vmatpush2.bf16.msra.mxu0 0
    %1297 = vmatprep.subr.bf16.mxu0 0
    %1298 = vmatpush2.bf16.msra.mxu0 0
    %1299 = vmatprep.subr.bf16.mxu0 0
    %1300 = vmatpush2.bf16.msra.mxu0 0
    %1301 = vmatprep.subr.bf16.mxu0 0
    %1302 = vmatpush2.bf16.msra.mxu0 0
    %1303 = vmatprep.mubr.bf16.mxu0 0
    %1304 = vmatmul.mubr.bf16.gmra.mxu0 %v297
    %v1305 = vpop.f32.mrf.mxu0
    %v1306 = vadd.f32 0.0, %v1305
    %v1307 = vpop.f32.mrf.mxu0
    %v1308 = vpop.f32.mrf.mxu0
    %v1309 = vadd.f32 0.0, %v1308
    %v1310 = vpop.f32.mrf.mxu0
    %1311 = vdwg.mxu0
    %v1313 = vlaneseq
    %v1314 = vshrl.u32 %v1313, 7
    %v1315 = vsub.s32 0, %v1314
    %v1316 = vrot.slane %v820, %v1315
    %v1318 = vadd.f32 %v1019, %v1316
    %v1319 = vadd.f32 %v1022, %v1316
    %v1320 = vadd.f32 %v1060, %v1316
    %v1321 = vadd.f32 %v1063, %v1316
    %v1322 = vadd.f32 %v1101, %v1316
    %v1323 = vadd.f32 %v1104, %v1316
    %v1324 = vadd.f32 %v1142, %v1316
    %v1325 = vadd.f32 %v1145, %v1316
    %v1326 = vadd.f32 %v1183, %v1316
    %v1327 = vadd.f32 %v1186, %v1316
    %v1328 = vadd.f32 %v1224, %v1316
    %v1329 = vadd.f32 %v1227, %v1316
    %v1330 = vadd.f32 %v1265, %v1316
    %v1331 = vadd.f32 %v1268, %v1316
    %v1332 = vadd.f32 %v1306, %v1316
    %v1333 = vadd.f32 %v1309, %v1316
    %v1334 = vadd.f32 %v1318, %v1319
    %v1335 = vadd.f32 %v1334, %v1320
    %v1336 = vadd.f32 %v1335, %v1321
    %v1337 = vadd.f32 %v1336, %v1322
    %v1338 = vadd.f32 %v1337, %v1323
    %v1339 = vadd.f32 %v1338, %v1324
    %v1340 = vadd.f32 %v1339, %v1325
    %v1341 = vadd.f32 %v1340, %v1326
    %v1342 = vadd.f32 %v1341, %v1327
    %v1343 = vadd.f32 %v1342, %v1328
    %v1344 = vadd.f32 %v1343, %v1329
    %v1345 = vadd.f32 %v1344, %v1330
    %v1346 = vadd.f32 %v1345, %v1331
    %v1347 = vadd.f32 %v1346, %v1332
    %v1348 = vadd.f32 %v1347, %v1333
    %v1349 = vrot.slane %v1348, 4
    %v1350 = vadd.f32 %v1348, %v1349
    %v1351 = vrot.slane %v1350, 2
    %v1352 = vadd.f32 %v1350, %v1351
    %v1353 = vrot.slane %v1352, 1
    %v1354 = vadd.f32 %v1352, %v1353
    %v1355 = vmul.f32 %v1354, %v670
    %v1356 = vsub.f32 %v1318, %v1355
    %v1357 = vsub.f32 %v1319, %v1355
    %v1358 = vsub.f32 %v1320, %v1355
    %v1359 = vsub.f32 %v1321, %v1355
    %v1360 = vsub.f32 %v1322, %v1355
    %v1361 = vsub.f32 %v1323, %v1355
    %v1362 = vsub.f32 %v1324, %v1355
    %v1363 = vsub.f32 %v1325, %v1355
    %v1364 = vsub.f32 %v1326, %v1355
    %v1365 = vsub.f32 %v1327, %v1355
    %v1366 = vsub.f32 %v1328, %v1355
    %v1367 = vsub.f32 %v1329, %v1355
    %v1368 = vsub.f32 %v1330, %v1355
    %v1369 = vsub.f32 %v1331, %v1355
    %v1370 = vsub.f32 %v1332, %v1355
    %v1371 = vsub.f32 %v1333, %v1355
    %v1372 = vmul.f32 %v1356, %v1356
    %v1373 = vmul.f32 %v1357, %v1357
    %v1374 = vmul.f32 %v1358, %v1358
    %v1375 = vmul.f32 %v1359, %v1359
    %v1376 = vmul.f32 %v1360, %v1360
    %v1377 = vmul.f32 %v1361, %v1361
    %v1378 = vmul.f32 %v1362, %v1362
    %v1379 = vmul.f32 %v1363, %v1363
    %v1380 = vmul.f32 %v1364, %v1364
    %v1381 = vmul.f32 %v1365, %v1365
    %v1382 = vmul.f32 %v1366, %v1366
    %v1383 = vmul.f32 %v1367, %v1367
    %v1384 = vmul.f32 %v1368, %v1368
    %v1385 = vmul.f32 %v1369, %v1369
    %v1386 = vmul.f32 %v1370, %v1370
    %v1387 = vmul.f32 %v1371, %v1371
    %v1388 = vadd.f32 %v1372, %v1373
    %v1389 = vadd.f32 %v1388, %v1374
    %v1390 = vadd.f32 %v1389, %v1375
    %v1391 = vadd.f32 %v1390, %v1376
    %v1392 = vadd.f32 %v1391, %v1377
    %v1393 = vadd.f32 %v1392, %v1378
    %v1394 = vadd.f32 %v1393, %v1379
    %v1395 = vadd.f32 %v1394, %v1380
    %v1396 = vadd.f32 %v1395, %v1381
    %v1397 = vadd.f32 %v1396, %v1382
    %v1398 = vadd.f32 %v1397, %v1383
    %v1399 = vadd.f32 %v1398, %v1384
    %v1400 = vadd.f32 %v1399, %v1385
    %v1401 = vadd.f32 %v1400, %v1386
    %v1402 = vadd.f32 %v1401, %v1387
    %v1403 = vrot.slane %v1402, 4
    %v1404 = vadd.f32 %v1402, %v1403
    %v1405 = vrot.slane %v1404, 2
    %v1406 = vadd.f32 %v1404, %v1405
    %v1407 = vrot.slane %v1406, 1
    %v1408 = vadd.f32 %v1406, %v1407
    %v1409 = vmul.f32 %v1408, %v670
    %v1410 = vadd.f32 %v1409, 1e-05
    %v1411 = vrsqrt.pop %v1410
    %v1412 = vmul.f32 %v1356, %v1411
    %v1413 = vmul.f32 %v1357, %v1411
    %v1414 = vmul.f32 %v1358, %v1411
    %v1415 = vmul.f32 %v1359, %v1411
    %v1416 = vmul.f32 %v1360, %v1411
    %v1417 = vmul.f32 %v1361, %v1411
    %v1418 = vmul.f32 %v1362, %v1411
    %v1419 = vmul.f32 %v1363, %v1411
    %v1420 = vmul.f32 %v1364, %v1411
    %v1421 = vmul.f32 %v1365, %v1411
    %v1422 = vmul.f32 %v1366, %v1411
    %v1423 = vmul.f32 %v1367, %v1411
    %v1424 = vmul.f32 %v1368, %v1411
    %v1425 = vmul.f32 %v1369, %v1411
    %v1426 = vmul.f32 %v1370, %v1411
    %v1427 = vmul.f32 %v1371, %v1411
    %v1429 = vlaneseq
    %v1430 = vshrl.u32 %v1429, 7
    %v1431 = vsub.s32 0, %v1430
    %v1432 = vrot.slane %v821, %v1431
    %v1434 = vmul.f32 %v1412, %v1432
    %v1435 = vmul.f32 %v1413, %v1432
    %v1436 = vmul.f32 %v1414, %v1432
    %v1437 = vmul.f32 %v1415, %v1432
    %v1438 = vmul.f32 %v1416, %v1432
    %v1439 = vmul.f32 %v1417, %v1432
    %v1440 = vmul.f32 %v1418, %v1432
    %v1441 = vmul.f32 %v1419, %v1432
    %v1442 = vmul.f32 %v1420, %v1432
    %v1443 = vmul.f32 %v1421, %v1432
    %v1444 = vmul.f32 %v1422, %v1432
    %v1445 = vmul.f32 %v1423, %v1432
    %v1446 = vmul.f32 %v1424, %v1432
    %v1447 = vmul.f32 %v1425, %v1432
    %v1448 = vmul.f32 %v1426, %v1432
    %v1449 = vmul.f32 %v1427, %v1432
    %v1451 = vlaneseq
    %v1452 = vshrl.u32 %v1451, 7
    %v1453 = vsub.s32 0, %v1452
    %v1454 = vrot.slane %v822, %v1453
    %v1456 = vadd.f32 %v1434, %v1454
    %v1457 = vadd.f32 %v1435, %v1454
    %v1458 = vadd.f32 %v1436, %v1454
    %v1459 = vadd.f32 %v1437, %v1454
    %v1460 = vadd.f32 %v1438, %v1454
    %v1461 = vadd.f32 %v1439, %v1454
    %v1462 = vadd.f32 %v1440, %v1454
    %v1463 = vadd.f32 %v1441, %v1454
    %v1464 = vadd.f32 %v1442, %v1454
    %v1465 = vadd.f32 %v1443, %v1454
    %v1466 = vadd.f32 %v1444, %v1454
    %v1467 = vadd.f32 %v1445, %v1454
    %v1468 = vadd.f32 %v1446, %v1454
    %v1469 = vadd.f32 %v1447, %v1454
    %v1470 = vadd.f32 %v1448, %v1454
    %v1471 = vadd.f32 %v1449, %v1454
    %v1472 = vmax.f32 %v1456, 0.0
    %v1473 = vmax.f32 %v1457, 0.0
    %v1474 = vmax.f32 %v1458, 0.0
    %v1475 = vmax.f32 %v1459, 0.0
    %v1476 = vmax.f32 %v1460, 0.0
    %v1477 = vmax.f32 %v1461, 0.0
    %v1478 = vmax.f32 %v1462, 0.0
    %v1479 = vmax.f32 %v1463, 0.0
    %v1480 = vmax.f32 %v1464, 0.0
    %v1481 = vmax.f32 %v1465, 0.0
    %v1482 = vmax.f32 %v1466, 0.0
    %v1483 = vmax.f32 %v1467, 0.0
    %v1484 = vmax.f32 %v1468, 0.0
    %v1485 = vmax.f32 %v1469, 0.0
    %v1486 = vmax.f32 %v1470, 0.0
    %v1487 = vmax.f32 %v1471, 0.0
    %v1488 = vadd.f32 %v1472, %v92
    %v1489 = vadd.f32 %v1473, %v93
    %v1490 = vadd.f32 %v1474, %v94
    %v1491 = vadd.f32 %v1475, %v95
    %v1492 = vadd.f32 %v1476, %v96
    %v1493 = vadd.f32 %v1477, %v97
    %v1494 = vadd.f32 %v1478, %v98
    %v1495 = vadd.f32 %v1479, %v99
    %v1496 = vadd.f32 %v1480, %v100
    %v1497 = vadd.f32 %v1481, %v101
    %v1498 = vadd.f32 %v1482, %v102
    %v1499 = vadd.f32 %v1483, %v103
    %v1500 = vadd.f32 %v1484, %v104
    %v1501 = vadd.f32 %v1485, %v105
    %v1502 = vadd.f32 %v1486, %v106
    %v1503 = vadd.f32 %v1487, %v107
    %v1504 = vmax.f32 %v1488, 0.0
    %v1505 = vmax.f32 %v1489, 0.0
    %v1506 = vmax.f32 %v1490, 0.0
    %v1507 = vmax.f32 %v1491, 0.0
    %v1508 = vmax.f32 %v1492, 0.0
    %v1509 = vmax.f32 %v1493, 0.0
    %v1510 = vmax.f32 %v1494, 0.0
    %v1511 = vmax.f32 %v1495, 0.0
    %v1512 = vmax.f32 %v1496, 0.0
    %v1513 = vmax.f32 %v1497, 0.0
    %v1514 = vmax.f32 %v1498, 0.0
    %v1515 = vmax.f32 %v1499, 0.0
    %v1516 = vmax.f32 %v1500, 0.0
    %v1517 = vmax.f32 %v1501, 0.0
    %v1518 = vmax.f32 %v1502, 0.0
    %v1519 = vmax.f32 %v1503, 0.0
    %1520 = vst [vmem:[#allocation10] sm:$0xff] %v1504
    %1521 = vst [vmem:[#allocation10 + $0x8] sm:$0xff] %v1505
    %1522 = vst [vmem:[#allocation10 + $0x10] sm:$0xff] %v1506
    %1523 = vst [vmem:[#allocation10 + $0x18] sm:$0xff] %v1507
    %1524 = vst [vmem:[#allocation10 + $0x20] sm:$0xff] %v1508
    %1525 = vst [vmem:[#allocation10 + $0x28] sm:$0xff] %v1509
    %1526 = vst [vmem:[#allocation10 + $0x30] sm:$0xff] %v1510
    %1527 = vst [vmem:[#allocation10 + $0x38] sm:$0xff] %v1511
    %1528 = vst [vmem:[#allocation10 + $0x40] sm:$0xff] %v1512
    %1529 = vst [vmem:[#allocation10 + $0x48] sm:$0xff] %v1513
    %1530 = vst [vmem:[#allocation10 + $0x50] sm:$0xff] %v1514
    %1531 = vst [vmem:[#allocation10 + $0x58] sm:$0xff] %v1515
    %1532 = vst [vmem:[#allocation10 + $0x60] sm:$0xff] %v1516
    %1533 = vst [vmem:[#allocation10 + $0x68] sm:$0xff] %v1517
    %1534 = vst [vmem:[#allocation10 + $0x70] sm:$0xff] %v1518
    %1535 = vst [vmem:[#allocation10 + $0x78] sm:$0xff] %v1519
    // Predicated region
    $region58: #{tpu_custom_call.1} parent=1 // pred_check
      _
    $region59: #{tpu_custom_call.1} parent=1 // pred_check_branch
      %1537 = sbr.rel (0) target = $region61
    $region60: #{tpu_custom_call.1} parent=1 // pred_region
      %s1539 = ssub.s32 2048, 2048
      %1540 = vsyncadd [#allocation4], %s1539
      %s1541 = sshll.u32 [#allocation10], 4
      %s1542 = int_to_ptr.vmem [resolvable:$true] %s1541
      %1547 = dma.vmem_to_hbm [thread:$0]  %s1542, 2048, %s10, [#allocation4], 128, 128, 8
    $region61: #{tpu_custom_call.1} parent=1 // pred_fallthru
      _
    // Predicated region
    $region62: #{tpu_custom_call.1} parent=1 // pred_check
      _
    $region63: #{tpu_custom_call.1} parent=1 // pred_check_branch
      %1549 = sbr.rel (0) target = $region65
    $region64: #{tpu_custom_call.1} parent=1 // pred_region
      %1550 = dma.done [#allocation4], 2048
    $region65: #{tpu_custom_call.1} parent=1 // pred_fallthru
      _
    %1551 = vsyncpa [#allocation3], 1
    %1552 = vsyncpa [#allocation6], 1
    %1553 = vsyncpa [#allocation9], 1
    %1554 = vsyncpa [#allocation4], 1

</llo_original>
